<compile_context>
chip_gen: v5e
topology: v5e:2x2
jax: 0.10.0
libtpu: 0.0.40
codegen_flags: <defaults>
</compile_context>

<pallas_src>
import jax
import jax.numpy as jnp
from jax.experimental import pallas as pl
from jax.experimental.pallas import tpu as pltpu

INPUT_SIZE = 256
HIDDEN_SIZE = 256
GATES = 4 * HIDDEN_SIZE            # 1024, PyTorch gate order [i|f|g|o]
N_TILES = 1                        # single block (best for single-TC v5e/v6e at B~8);
                                   # set to 2 for a v7x 2-TC split once the sequence
                                   # loop is fused in-kernel.
TILE = HIDDEN_SIZE // N_TILES      # 256 hidden columns per grid step
GATE_TILE = 4 * TILE               # 1024 gate columns per grid step


def prepare_lstm_params(w_ih, w_hh, b_ih, b_hh, num_tiles=N_TILES):
    """One-time (init-time) parameter repacking.

    - transpose W_ih / W_hh to (in_features, 4H): no per-call transpose ever
    - reorder gate columns tile-major so hidden tile j owns contiguous [i_j|f_j|g_j|o_j]
      (identity when num_tiles == 1)
    - weights in bf16 (halves the HBM weight stream), bias pre-summed, f32
    """
    tile = HIDDEN_SIZE // num_tiles

    def repack(w):                                   # (4H, in) -> (in, 4H) tile-major
        w_t = jnp.transpose(w)                       # (in, 4H) = [i|f|g|o]
        return (w_t.reshape(w_t.shape[0], 4, num_tiles, tile)
                    .transpose(0, 2, 1, 3)
                    .reshape(w_t.shape[0], GATES))

    w_ih_t = repack(w_ih).astype(jnp.bfloat16)       # (256, 1024)
    w_hh_t = repack(w_hh).astype(jnp.bfloat16)       # (256, 1024)
    b_fused = ((b_ih + b_hh).reshape(4, num_tiles, tile)
                             .transpose(1, 0, 2)
                             .reshape(1, GATES)).astype(jnp.float32)
    return w_ih_t, w_hh_t, b_fused


def lstm_cell_kernel(xt_ref, h_ref, c_ref, w_ih_ref, w_hh_ref, b_ref,
                     h_out_ref, c_out_ref):
    # Two bf16 MXU dots summed into one f32 gates value; all gate math in f32.
    gates = (jnp.dot(xt_ref[...].astype(jnp.bfloat16), w_ih_ref[...],
                     preferred_element_type=jnp.float32)
             + jnp.dot(h_ref[...].astype(jnp.bfloat16), w_hh_ref[...],
                       preferred_element_type=jnp.float32)
             + b_ref[...])
    i_g = jax.nn.sigmoid(gates[:, 0 * TILE:1 * TILE])
    f_g = jax.nn.sigmoid(gates[:, 1 * TILE:2 * TILE])
    g_g = jnp.tanh(gates[:, 2 * TILE:3 * TILE])
    o_g = jax.nn.sigmoid(gates[:, 3 * TILE:4 * TILE])

    c_new = f_g * c_ref[...].astype(jnp.float32) + i_g * g_g
    c_out_ref[...] = c_new.astype(c_out_ref.dtype)
    h_out_ref[...] = (o_g * jnp.tanh(c_new)).astype(h_out_ref.dtype)


@jax.jit
def lstm_cell(xt, h, c, w_ih_t, w_hh_t, b_fused):
    """xt, h, c: (B, 256) f32. Weights from prepare_lstm_params. Returns (h', c')."""
    B = xt.shape[0]

    cost = pl.CostEstimate(
        flops=2 * B * (INPUT_SIZE + HIDDEN_SIZE) * GATES,
        transcendentals=5 * B * HIDDEN_SIZE,
        bytes_accessed=(w_ih_t.size + w_hh_t.size) * 2      # bf16 weight stream
                       + b_fused.size * 4
                       + 3 * B * HIDDEN_SIZE * 4             # xt, h, c in
                       + 2 * B * HIDDEN_SIZE * 4,            # h', c' out
    )

    h_new, c_new = pl.pallas_call(
        lstm_cell_kernel,
        out_shape=(
            jax.ShapeDtypeStruct((B, HIDDEN_SIZE), xt.dtype),
            jax.ShapeDtypeStruct((B, HIDDEN_SIZE), xt.dtype),
        ),
        grid_spec=pltpu.PrefetchScalarGridSpec(
            num_scalar_prefetch=0,
            grid=(N_TILES,),
            in_specs=[
                pl.BlockSpec((B, INPUT_SIZE), lambda j: (0, 0)),
                pl.BlockSpec((B, HIDDEN_SIZE), lambda j: (0, 0)),
                pl.BlockSpec((B, TILE), lambda j: (0, j)),
                pl.BlockSpec((INPUT_SIZE, GATE_TILE), lambda j: (0, j)),
                pl.BlockSpec((HIDDEN_SIZE, GATE_TILE), lambda j: (0, j)),
                pl.BlockSpec((1, GATE_TILE), lambda j: (0, j)),
            ],
            out_specs=[
                pl.BlockSpec((B, TILE), lambda j: (0, j)),
                pl.BlockSpec((B, TILE), lambda j: (0, j)),
            ],
        ),
        compiler_params=pltpu.CompilerParams(
            # Hidden-column tiles are fully independent; harmless at N_TILES=1.
            dimension_semantics=("parallel",)),
        cost_estimate=cost,
    )(xt, h, c, w_ih_t, w_hh_t, b_fused)
    return h_new, c_new


def lstm_cell_ref(xt, h, c, w_ih, w_hh, b_ih, b_hh):
    gates = xt @ w_ih.T + b_ih + h @ w_hh.T + b_hh
    i_g = jax.nn.sigmoid(gates[:, 0 * HIDDEN_SIZE:1 * HIDDEN_SIZE])
    f_g = jax.nn.sigmoid(gates[:, 1 * HIDDEN_SIZE:2 * HIDDEN_SIZE])
    g_g = jnp.tanh(gates[:, 2 * HIDDEN_SIZE:3 * HIDDEN_SIZE])
    o_g = jax.nn.sigmoid(gates[:, 3 * HIDDEN_SIZE:4 * HIDDEN_SIZE])
    c_new = f_g * c + i_g * g_g
    h_new = o_g * jnp.tanh(c_new)
    return h_new, c_new


if __name__ == "__main__":
    key = jax.random.PRNGKey(0)
    kx, kh, kc, k1, k2, k3, k4 = jax.random.split(key, 7)

    B = 8  # multiple of 8 keeps the f32 (8,128) sublane tile exactly met
    # PyTorch nn.LSTMCell default init: U(-1/sqrt(hidden), 1/sqrt(hidden))
    bound = 1.0 / jnp.sqrt(jnp.float32(HIDDEN_SIZE))
    xt = jax.random.normal(kx, (B, INPUT_SIZE), jnp.float32)
    h0 = jax.random.normal(kh, (B, HIDDEN_SIZE), jnp.float32)
    c0 = jax.random.normal(kc, (B, HIDDEN_SIZE), jnp.float32)
    w_ih = jax.random.uniform(k1, (GATES, INPUT_SIZE), jnp.float32, -bound, bound)
    w_hh = jax.random.uniform(k2, (GATES, HIDDEN_SIZE), jnp.float32, -bound, bound)
    b_ih = jax.random.uniform(k3, (GATES,), jnp.float32, -bound, bound)
    b_hh = jax.random.uniform(k4, (GATES,), jnp.float32, -bound, bound)

    # One-time weight repack (would live at model init in real use).
    w_ih_t, w_hh_t, b_fused = prepare_lstm_params(w_ih, w_hh, b_ih, b_hh)

    h_new, c_new = lstm_cell(xt, h0, c0, w_ih_t, w_hh_t, b_fused)
    jax.block_until_ready((h_new, c_new))

    h_ref, c_ref = lstm_cell_ref(xt, h0, c0, w_ih, w_hh, b_ih, b_hh)
    # bf16 weight/activation MXU path -> loosen tolerance vs the pure-f32 reference.
    assert jnp.allclose(h_new, h_ref, atol=2e-2, rtol=2e-2), float(jnp.max(jnp.abs(h_new - h_ref)))
    assert jnp.allclose(c_new, c_ref, atol=2e-2, rtol=2e-2), float(jnp.max(jnp.abs(c_new - c_ref)))

    print("KERNEL_OK")
</pallas_src>

<mosaic_0001>
module attributes {stable_mosaic.version = 11 : i64} {
  func.func @lstm_cell_kernel(%arg0: i32, %arg1: memref<8x256xf32, #tpu.memory_space<vmem>>, %arg2: memref<8x256xf32, #tpu.memory_space<vmem>>, %arg3: memref<8x256xf32, #tpu.memory_space<vmem>>, %arg4: memref<256x1024xbf16, #tpu.memory_space<vmem>>, %arg5: memref<256x1024xbf16, #tpu.memory_space<vmem>>, %arg6: memref<1x1024xf32, #tpu.memory_space<vmem>>, %arg7: memref<8x256xf32, #tpu.memory_space<vmem>>, %arg8: memref<8x256xf32, #tpu.memory_space<vmem>>) attributes {dimension_semantics = [#tpu.dimension_semantics<parallel>], iteration_bounds = array<i64: 1>, scalar_prefetch = 0 : i64, scratch_operands = 0 : i64, tpu.core_type = #tpu.core_type<tc>, window_params = [{pipeline_mode = #tpu.pipeline_mode<synchronous>, transform_indices = @transform_0, window_bounds = array<i64: 8, 256>}, {pipeline_mode = #tpu.pipeline_mode<synchronous>, transform_indices = @transform_1, window_bounds = array<i64: 8, 256>}, {transform_indices = @transform_2, window_bounds = array<i64: 8, 256>}, {transform_indices = @transform_3, window_bounds = array<i64: 256, 1024>}, {transform_indices = @transform_4, window_bounds = array<i64: 256, 1024>}, {transform_indices = @transform_5, window_bounds = array<i64: 1, 1024>}, {transform_indices = @transform_6, window_bounds = array<i64: 8, 256>}, {transform_indices = @transform_7, window_bounds = array<i64: 8, 256>}]} {
    %c0 = arith.constant 0 : index
    %c0_0 = arith.constant 0 : index
    %0 = vector.load %arg1[%c0, %c0_0] : memref<8x256xf32, #tpu.memory_space<vmem>>, vector<8x256xf32>
    %1 = arith.truncf %0 : vector<8x256xf32> to vector<8x256xbf16>
    %c0_1 = arith.constant 0 : index
    %c0_2 = arith.constant 0 : index
    %2 = vector.load %arg4[%c0_1, %c0_2] : memref<256x1024xbf16, #tpu.memory_space<vmem>>, vector<256x1024xbf16>
    %cst = arith.constant dense<0.000000e+00> : vector<8x1024xf32>
    %3 = tpu.matmul %1, %2, %cst {dimension_numbers = #tpu.dot_dimension_numbers<[1], [0], [0], [1], [0, 0, 1, 1], [], []>} : vector<8x256xbf16>, vector<256x1024xbf16>, vector<8x1024xf32> -> vector<8x1024xf32>
    %c0_3 = arith.constant 0 : index
    %c0_4 = arith.constant 0 : index
    %4 = vector.load %arg2[%c0_3, %c0_4] : memref<8x256xf32, #tpu.memory_space<vmem>>, vector<8x256xf32>
    %5 = arith.truncf %4 : vector<8x256xf32> to vector<8x256xbf16>
    %c0_5 = arith.constant 0 : index
    %c0_6 = arith.constant 0 : index
    %6 = vector.load %arg5[%c0_5, %c0_6] : memref<256x1024xbf16, #tpu.memory_space<vmem>>, vector<256x1024xbf16>
    %cst_7 = arith.constant dense<0.000000e+00> : vector<8x1024xf32>
    %7 = tpu.matmul %5, %6, %cst_7 {dimension_numbers = #tpu.dot_dimension_numbers<[1], [0], [0], [1], [0, 0, 1, 1], [], []>} : vector<8x256xbf16>, vector<256x1024xbf16>, vector<8x1024xf32> -> vector<8x1024xf32>
    %8 = arith.addf %3, %7 : vector<8x1024xf32>
    %c0_8 = arith.constant 0 : index
    %c0_9 = arith.constant 0 : index
    %9 = vector.load %arg6[%c0_8, %c0_9] : memref<1x1024xf32, #tpu.memory_space<vmem>>, vector<1x1024xf32>
    %10 = vector.broadcast %9 : vector<1x1024xf32> to vector<8x1024xf32>
    %11 = arith.addf %8, %10 : vector<8x1024xf32>
    %12 = vector.extract_strided_slice %11 {offsets = [0, 0], sizes = [8, 256], strides = [1, 1]} : vector<8x1024xf32> to vector<8x256xf32>
    %13 = arith.negf %12 : vector<8x256xf32>
    %14 = math.exp %13 : vector<8x256xf32>
    %cst_10 = arith.constant 1.000000e+00 : f32
    %15 = vector.broadcast %cst_10 : f32 to vector<8x256xf32>
    %16 = arith.addf %15, %14 : vector<8x256xf32>
    %17 = arith.divf %15, %16 : vector<8x256xf32>
    %18 = vector.extract_strided_slice %11 {offsets = [0, 256], sizes = [8, 256], strides = [1, 1]} : vector<8x1024xf32> to vector<8x256xf32>
    %19 = arith.negf %18 : vector<8x256xf32>
    %20 = math.exp %19 : vector<8x256xf32>
    %cst_11 = arith.constant 1.000000e+00 : f32
    %21 = vector.broadcast %cst_11 : f32 to vector<8x256xf32>
    %22 = arith.addf %21, %20 : vector<8x256xf32>
    %23 = arith.divf %21, %22 : vector<8x256xf32>
    %24 = vector.extract_strided_slice %11 {offsets = [0, 512], sizes = [8, 256], strides = [1, 1]} : vector<8x1024xf32> to vector<8x256xf32>
    %25 = math.tanh %24 : vector<8x256xf32>
    %26 = vector.extract_strided_slice %11 {offsets = [0, 768], sizes = [8, 256], strides = [1, 1]} : vector<8x1024xf32> to vector<8x256xf32>
    %27 = arith.negf %26 : vector<8x256xf32>
    %28 = math.exp %27 : vector<8x256xf32>
    %cst_12 = arith.constant 1.000000e+00 : f32
    %29 = vector.broadcast %cst_12 : f32 to vector<8x256xf32>
    %30 = arith.addf %29, %28 : vector<8x256xf32>
    %31 = arith.divf %29, %30 : vector<8x256xf32>
    %c0_13 = arith.constant 0 : index
    %c0_14 = arith.constant 0 : index
    %32 = vector.load %arg3[%c0_13, %c0_14] : memref<8x256xf32, #tpu.memory_space<vmem>>, vector<8x256xf32>
    %33 = arith.mulf %23, %32 : vector<8x256xf32>
    %34 = arith.mulf %17, %25 : vector<8x256xf32>
    %35 = arith.addf %33, %34 : vector<8x256xf32>
    %c0_15 = arith.constant 0 : index
    %c0_16 = arith.constant 0 : index
    %36 = vector.load %arg8[%c0_15, %c0_16] : memref<8x256xf32, #tpu.memory_space<vmem>>, vector<8x256xf32>
    tpu.vector_store %arg8[%c0_15, %c0_16], %35 {strides = array<i32>} : memref<8x256xf32, #tpu.memory_space<vmem>>, vector<8x256xf32>,
    %37 = math.tanh %35 : vector<8x256xf32>
    %38 = arith.mulf %31, %37 : vector<8x256xf32>
    %c0_17 = arith.constant 0 : index
    %c0_18 = arith.constant 0 : index
    %39 = vector.load %arg7[%c0_17, %c0_18] : memref<8x256xf32, #tpu.memory_space<vmem>>, vector<8x256xf32>
    tpu.vector_store %arg7[%c0_17, %c0_18], %38 {strides = array<i32>} : memref<8x256xf32, #tpu.memory_space<vmem>>, vector<8x256xf32>,
    return
  }
  func.func @transform_0(%arg0: i32) -> (i32, i32) {
    %c0_i32 = arith.constant 0 : i32
    %c0_i32_0 = arith.constant 0 : i32
    %c0_i32_1 = arith.constant 0 : i32
    return %c0_i32, %c0_i32_0 : i32, i32
  }
  func.func @transform_1(%arg0: i32) -> (i32, i32) {
    %c0_i32 = arith.constant 0 : i32
    %c0_i32_0 = arith.constant 0 : i32
    %c0_i32_1 = arith.constant 0 : i32
    return %c0_i32, %c0_i32_0 : i32, i32
  }
  func.func @transform_2(%arg0: i32) -> (i32, i32) {
    %c0_i32 = arith.constant 0 : i32
    %c0_i32_0 = arith.constant 0 : i32
    return %c0_i32, %arg0 : i32, i32
  }
  func.func @transform_3(%arg0: i32) -> (i32, i32) {
    %c0_i32 = arith.constant 0 : i32
    %c0_i32_0 = arith.constant 0 : i32
    return %c0_i32, %arg0 : i32, i32
  }
  func.func @transform_4(%arg0: i32) -> (i32, i32) {
    %c0_i32 = arith.constant 0 : i32
    %c0_i32_0 = arith.constant 0 : i32
    return %c0_i32, %arg0 : i32, i32
  }
  func.func @transform_5(%arg0: i32) -> (i32, i32) {
    %c0_i32 = arith.constant 0 : i32
    %c0_i32_0 = arith.constant 0 : i32
    return %c0_i32, %arg0 : i32, i32
  }
  func.func @transform_6(%arg0: i32) -> (i32, i32) {
    %c0_i32 = arith.constant 0 : i32
    %c0_i32_0 = arith.constant 0 : i32
    return %c0_i32, %arg0 : i32, i32
  }
  func.func @transform_7(%arg0: i32) -> (i32, i32) {
    %c0_i32 = arith.constant 0 : i32
    %c0_i32_0 = arith.constant 0 : i32
    return %c0_i32, %arg0 : i32, i32
  }
}

</mosaic_0001>

<llo_original>
// kernel: lstm_cell.1
$region0: #{lstm_cell.1}
  #allocation0 [shape = 'u32[]', space=smem, size = 0x4, offset = 0x4, fixed_abs, tag = 'smem constant byte address 0x4 - core index']
  #allocation1 [shape = 'u32[72,128]{1,0:T(1,128)}', space=vmem, size = 0x9000, scoped, tag = 'internal scratch']
  %s0 = inlined_call_operand.hbm [shape: f32[8,256], index: 0, kind: input, shape index: {}]
  %s1 = inlined_call_operand.hbm [shape: f32[8,256], index: 1, kind: input, shape index: {}]
  %s2 = inlined_call_operand.hbm [shape: f32[8,256], index: 2, kind: input, shape index: {}]
  %s3 = inlined_call_operand.hbm [shape: bf16[256,1024], index: 3, kind: input, shape index: {}]
  %s4 = inlined_call_operand.hbm [shape: bf16[256,1024], index: 4, kind: input, shape index: {}]
  %s5 = inlined_call_operand.hbm [shape: f32[1,1024], index: 5, kind: input, shape index: {}]
  %s6 = inlined_call_operand.hbm [shape: f32[8,256], index: 6, kind: output, shape index: {0}]
  %s7 = inlined_call_operand.hbm [shape: f32[8,256], index: 7, kind: output, shape index: {1}]
  %8 = xla_tuple %s6, %s7
  %s9 = sld [smem:[#allocation0]]
  $region66: #{lstm_cell.1} parent=0
    _
  %s11 = ssub.s32 1, %s9
  %s12 = scalar_select 0, %s11, %s9
  $region1: #{lstm_cell.1} parent=0
    #allocation2 [shape = 'u8[8192]{0}', space=vmem, size = 0x2000, scoped, tag = 'input window, operand 0, single buffered']
    #allocation3 [shape = 's32[1]{0}', space=sflag, size = 0x4, scoped, tag = 'scoped memory for lstm_cell.1']
    #allocation4 [shape = 's32[1]{0}', space=sflag, size = 0x4, scoped, tag = 'scoped memory for lstm_cell.1']
    #allocation5 [shape = 'u8[8192]{0}', space=vmem, size = 0x2000, scoped, tag = 'input window, operand 1, single buffered']
    #allocation6 [shape = 's32[1]{0}', space=sflag, size = 0x4, scoped, tag = 'scoped memory for lstm_cell.1']
    #allocation7 [shape = 'u8[8192]{0}', space=vmem, size = 0x2000, scoped, tag = 'input window, operand 2, single buffered']
    #allocation8 [shape = 'u8[524288]{0}', space=vmem, size = 0x80000, scoped, tag = 'input window, operand 3, single buffered']
    #allocation9 [shape = 's32[1]{0}', space=sflag, size = 0x4, scoped, tag = 'scoped memory for lstm_cell.1']
    #allocation10 [shape = 'u8[524288]{0}', space=vmem, size = 0x80000, scoped, tag = 'input window, operand 4, single buffered']
    #allocation11 [shape = 'u8[4096]{0}', space=vmem, size = 0x1000, scoped, tag = 'input window, operand 5, single buffered']
    #allocation12 [shape = 's32[1]{0}', space=sflag, size = 0x4, scoped, tag = 'scoped memory for lstm_cell.1']
    #allocation13 [shape = 'u8[8192]{0}', space=vmem, size = 0x2000, scoped, tag = 'output window, operand 0, single buffered']
    #allocation14 [shape = 'u8[8192]{0}', space=vmem, size = 0x2000, scoped, tag = 'output window, operand 1, single buffered']
    #allocation15 [shape = 's32[1]{0}', space=sflag, size = 0x4, scoped, tag = 'scoped memory for lstm_cell.1']
    %13 = vsyncpa [#allocation3], 0
    %14 = vsyncpa [#allocation6], 0
    %15 = vsyncpa [#allocation9], 0
    %16 = vsyncpa [#allocation12], 0
    %17 = vsyncpa [#allocation4], 0
    %18 = vsyncpa [#allocation15], 0
    // Predicated region
    $region2: #{lstm_cell.1} parent=1 // pred_check
      _
    $region3: #{lstm_cell.1} parent=1 // pred_check_branch
      %20 = sbr.rel (0) target = $region5
    $region4: #{lstm_cell.1} parent=1 // pred_region
      %22 = vsyncadd [#allocation3], 0
      %s24 = sshll.u32 %s0, 4
      %s25 = int_to_ptr.hbm [resolvable:$true] %s24
      %s26 = sshll.u32 [#allocation2], 4
      %s27 = int_to_ptr.vmem [resolvable:$true] %s26
      %29 = dma.hbm_to_vmem [thread:$0]  %s25, 256, %s27, [#allocation3]
    $region5: #{lstm_cell.1} parent=1 // pred_fallthru
      _
    // Predicated region
    $region6: #{lstm_cell.1} parent=1 // pred_check
      _
    $region7: #{lstm_cell.1} parent=1 // pred_check_branch
      %31 = sbr.rel (0) target = $region9
    $region8: #{lstm_cell.1} parent=1 // pred_region
      %33 = vsyncadd [#allocation6], 0
      %s35 = sshll.u32 %s1, 4
      %s36 = int_to_ptr.hbm [resolvable:$true] %s35
      %s37 = sshll.u32 [#allocation5], 4
      %s38 = int_to_ptr.vmem [resolvable:$true] %s37
      %40 = dma.hbm_to_vmem [thread:$0]  %s36, 256, %s38, [#allocation6]
    $region9: #{lstm_cell.1} parent=1 // pred_fallthru
      _
    // Predicated region
    $region10: #{lstm_cell.1} parent=1 // pred_check
      _
    $region11: #{lstm_cell.1} parent=1 // pred_check_branch
      %42 = sbr.rel (0) target = $region13
    $region12: #{lstm_cell.1} parent=1 // pred_region
      %44 = vsyncadd [#allocation6], 0
      %s46 = sshll.u32 %s2, 4
      %s47 = int_to_ptr.hbm [resolvable:$true] %s46
      %s48 = sshll.u32 [#allocation7], 4
      %s49 = int_to_ptr.vmem [resolvable:$true] %s48
      %51 = dma.hbm_to_vmem [thread:$0]  %s47, 256, %s49, [#allocation6]
    $region13: #{lstm_cell.1} parent=1 // pred_fallthru
      _
    // Predicated region
    $region14: #{lstm_cell.1} parent=1 // pred_check
      _
    $region15: #{lstm_cell.1} parent=1 // pred_check_branch
      %53 = sbr.rel (0) target = $region17
    $region16: #{lstm_cell.1} parent=1 // pred_region
      %55 = vsyncadd [#allocation9], 0
      %s56 = sshll.u32 %s3, 4
      %s57 = int_to_ptr.hbm [resolvable:$true] %s56
      %s58 = sshll.u32 [#allocation8], 4
      %s59 = int_to_ptr.vmem [resolvable:$true] %s58
      %64 = dma.hbm_to_vmem [thread:$0]  %s57, 16384, %s59, [#allocation9], 512, 512, 32
    $region17: #{lstm_cell.1} parent=1 // pred_fallthru
      _
    // Predicated region
    $region18: #{lstm_cell.1} parent=1 // pred_check
      _
    $region19: #{lstm_cell.1} parent=1 // pred_check_branch
      %66 = sbr.rel (0) target = $region21
    $region20: #{lstm_cell.1} parent=1 // pred_region
      %68 = vsyncadd [#allocation9], 0
      %s69 = sshll.u32 %s4, 4
      %s70 = int_to_ptr.hbm [resolvable:$true] %s69
      %s71 = sshll.u32 [#allocation10], 4
      %s72 = int_to_ptr.vmem [resolvable:$true] %s71
      %77 = dma.hbm_to_vmem [thread:$0]  %s70, 16384, %s72, [#allocation9], 512, 512, 32
    $region21: #{lstm_cell.1} parent=1 // pred_fallthru
      _
    // Predicated region
    $region22: #{lstm_cell.1} parent=1 // pred_check
      _
    $region23: #{lstm_cell.1} parent=1 // pred_check_branch
      %79 = sbr.rel (0) target = $region25
    $region24: #{lstm_cell.1} parent=1 // pred_region
      %81 = vsyncadd [#allocation12], 0
      %s83 = sshll.u32 %s5, 4
      %s84 = int_to_ptr.hbm [resolvable:$true] %s83
      %s85 = sshll.u32 [#allocation11], 4
      %s86 = int_to_ptr.vmem [resolvable:$true] %s85
      %88 = dma.hbm_to_vmem [thread:$0]  %s84, 128, %s86, [#allocation12]
    $region25: #{lstm_cell.1} parent=1 // pred_fallthru
      _
    // Predicated region
    $region26: #{lstm_cell.1} parent=1 // pred_check
      _
    $region27: #{lstm_cell.1} parent=1 // pred_check_branch
      %90 = sbr.rel (0) target = $region29
    $region28: #{lstm_cell.1} parent=1 // pred_region
      %92 = dma.done [#allocation3], 256
    $region29: #{lstm_cell.1} parent=1 // pred_fallthru
      _
    // Predicated region
    $region30: #{lstm_cell.1} parent=1 // pred_check
      _
    $region31: #{lstm_cell.1} parent=1 // pred_check_branch
      %94 = sbr.rel (0) target = $region33
    $region32: #{lstm_cell.1} parent=1 // pred_region
      %96 = dma.done [#allocation6], 256
    $region33: #{lstm_cell.1} parent=1 // pred_fallthru
      _
    // Predicated region
    $region34: #{lstm_cell.1} parent=1 // pred_check
      _
    $region35: #{lstm_cell.1} parent=1 // pred_check_branch
      %98 = sbr.rel (0) target = $region37
    $region36: #{lstm_cell.1} parent=1 // pred_region
      %100 = dma.done [#allocation6], 256
    $region37: #{lstm_cell.1} parent=1 // pred_fallthru
      _
    // Predicated region
    $region38: #{lstm_cell.1} parent=1 // pred_check
      _
    $region39: #{lstm_cell.1} parent=1 // pred_check_branch
      %102 = sbr.rel (0) target = $region41
    $region40: #{lstm_cell.1} parent=1 // pred_region
      %104 = dma.done [#allocation9], 16384
    $region41: #{lstm_cell.1} parent=1 // pred_fallthru
      _
    // Predicated region
    $region42: #{lstm_cell.1} parent=1 // pred_check
      _
    $region43: #{lstm_cell.1} parent=1 // pred_check_branch
      %106 = sbr.rel (0) target = $region45
    $region44: #{lstm_cell.1} parent=1 // pred_region
      %108 = dma.done [#allocation9], 16384
    $region45: #{lstm_cell.1} parent=1 // pred_fallthru
      _
    // Predicated region
    $region46: #{lstm_cell.1} parent=1 // pred_check
      _
    $region47: #{lstm_cell.1} parent=1 // pred_check_branch
      %110 = sbr.rel (0) target = $region49
    $region48: #{lstm_cell.1} parent=1 // pred_region
      %112 = dma.done [#allocation12], 128
    $region49: #{lstm_cell.1} parent=1 // pred_fallthru
      _
    %v113 = vld [vmem:[#allocation2] sm:$0xff]
    %v114 = vld [vmem:[#allocation2 + $0x8] sm:$0xff]
    %v115 = vpack.c.bf16 %v113, %v113
    %v116 = vpack.c.bf16 %v114, %v114
    %v117 = vld [vmem:[#allocation8] sm:$0xff]
    %v118 = vld [vmem:[#allocation8 + $0x8] sm:$0xff]
    %v119 = vld [vmem:[#allocation8 + $0x10] sm:$0xff]
    %v120 = vld [vmem:[#allocation8 + $0x18] sm:$0xff]
    %v121 = vld [vmem:[#allocation8 + $0x20] sm:$0xff]
    %v122 = vld [vmem:[#allocation8 + $0x28] sm:$0xff]
    %v123 = vld [vmem:[#allocation8 + $0x30] sm:$0xff]
    %v124 = vld [vmem:[#allocation8 + $0x38] sm:$0xff]
    %v125 = vld [vmem:[#allocation8 + $0x40] sm:$0xff]
    %v126 = vld [vmem:[#allocation8 + $0x48] sm:$0xff]
    %v127 = vld [vmem:[#allocation8 + $0x50] sm:$0xff]
    %v128 = vld [vmem:[#allocation8 + $0x58] sm:$0xff]
    %v129 = vld [vmem:[#allocation8 + $0x60] sm:$0xff]
    %v130 = vld [vmem:[#allocation8 + $0x68] sm:$0xff]
    %v131 = vld [vmem:[#allocation8 + $0x70] sm:$0xff]
    %v132 = vld [vmem:[#allocation8 + $0x78] sm:$0xff]
    %v133 = vld [vmem:[#allocation8 + $0x80] sm:$0xff]
    %v134 = vld [vmem:[#allocation8 + $0x88] sm:$0xff]
    %v135 = vld [vmem:[#allocation8 + $0x90] sm:$0xff]
    %v136 = vld [vmem:[#allocation8 + $0x98] sm:$0xff]
    %v137 = vld [vmem:[#allocation8 + $0xa0] sm:$0xff]
    %v138 = vld [vmem:[#allocation8 + $0xa8] sm:$0xff]
    %v139 = vld [vmem:[#allocation8 + $0xb0] sm:$0xff]
    %v140 = vld [vmem:[#allocation8 + $0xb8] sm:$0xff]
    %v141 = vld [vmem:[#allocation8 + $0xc0] sm:$0xff]
    %v142 = vld [vmem:[#allocation8 + $0xc8] sm:$0xff]
    %v143 = vld [vmem:[#allocation8 + $0xd0] sm:$0xff]
    %v144 = vld [vmem:[#allocation8 + $0xd8] sm:$0xff]
    %v145 = vld [vmem:[#allocation8 + $0xe0] sm:$0xff]
    %v146 = vld [vmem:[#allocation8 + $0xe8] sm:$0xff]
    %v147 = vld [vmem:[#allocation8 + $0xf0] sm:$0xff]
    %v148 = vld [vmem:[#allocation8 + $0xf8] sm:$0xff]
    %v149 = vld [vmem:[#allocation8 + $0x100] sm:$0xff]
    %v150 = vld [vmem:[#allocation8 + $0x108] sm:$0xff]
    %v151 = vld [vmem:[#allocation8 + $0x110] sm:$0xff]
    %v152 = vld [vmem:[#allocation8 + $0x118] sm:$0xff]
    %v153 = vld [vmem:[#allocation8 + $0x120] sm:$0xff]
    %v154 = vld [vmem:[#allocation8 + $0x128] sm:$0xff]
    %v155 = vld [vmem:[#allocation8 + $0x130] sm:$0xff]
    %v156 = vld [vmem:[#allocation8 + $0x138] sm:$0xff]
    %v157 = vld [vmem:[#allocation8 + $0x140] sm:$0xff]
    %v158 = vld [vmem:[#allocation8 + $0x148] sm:$0xff]
    %v159 = vld [vmem:[#allocation8 + $0x150] sm:$0xff]
    %v160 = vld [vmem:[#allocation8 + $0x158] sm:$0xff]
    %v161 = vld [vmem:[#allocation8 + $0x160] sm:$0xff]
    %v162 = vld [vmem:[#allocation8 + $0x168] sm:$0xff]
    %v163 = vld [vmem:[#allocation8 + $0x170] sm:$0xff]
    %v164 = vld [vmem:[#allocation8 + $0x178] sm:$0xff]
    %v165 = vld [vmem:[#allocation8 + $0x180] sm:$0xff]
    %v166 = vld [vmem:[#allocation8 + $0x188] sm:$0xff]
    %v167 = vld [vmem:[#allocation8 + $0x190] sm:$0xff]
    %v168 = vld [vmem:[#allocation8 + $0x198] sm:$0xff]
    %v169 = vld [vmem:[#allocation8 + $0x1a0] sm:$0xff]
    %v170 = vld [vmem:[#allocation8 + $0x1a8] sm:$0xff]
    %v171 = vld [vmem:[#allocation8 + $0x1b0] sm:$0xff]
    %v172 = vld [vmem:[#allocation8 + $0x1b8] sm:$0xff]
    %v173 = vld [vmem:[#allocation8 + $0x1c0] sm:$0xff]
    %v174 = vld [vmem:[#allocation8 + $0x1c8] sm:$0xff]
    %v175 = vld [vmem:[#allocation8 + $0x1d0] sm:$0xff]
    %v176 = vld [vmem:[#allocation8 + $0x1d8] sm:$0xff]
    %v177 = vld [vmem:[#allocation8 + $0x1e0] sm:$0xff]
    %v178 = vld [vmem:[#allocation8 + $0x1e8] sm:$0xff]
    %v179 = vld [vmem:[#allocation8 + $0x1f0] sm:$0xff]
    %v180 = vld [vmem:[#allocation8 + $0x1f8] sm:$0xff]
    %v181 = vld [vmem:[#allocation8 + $0x200] sm:$0xff]
    %v182 = vld [vmem:[#allocation8 + $0x208] sm:$0xff]
    %v183 = vld [vmem:[#allocation8 + $0x210] sm:$0xff]
    %v184 = vld [vmem:[#allocation8 + $0x218] sm:$0xff]
    %v185 = vld [vmem:[#allocation8 + $0x220] sm:$0xff]
    %v186 = vld [vmem:[#allocation8 + $0x228] sm:$0xff]
    %v187 = vld [vmem:[#allocation8 + $0x230] sm:$0xff]
    %v188 = vld [vmem:[#allocation8 + $0x238] sm:$0xff]
    %v189 = vld [vmem:[#allocation8 + $0x240] sm:$0xff]
    %v190 = vld [vmem:[#allocation8 + $0x248] sm:$0xff]
    %v191 = vld [vmem:[#allocation8 + $0x250] sm:$0xff]
    %v192 = vld [vmem:[#allocation8 + $0x258] sm:$0xff]
    %v193 = vld [vmem:[#allocation8 + $0x260] sm:$0xff]
    %v194 = vld [vmem:[#allocation8 + $0x268] sm:$0xff]
    %v195 = vld [vmem:[#allocation8 + $0x270] sm:$0xff]
    %v196 = vld [vmem:[#allocation8 + $0x278] sm:$0xff]
    %v197 = vld [vmem:[#allocation8 + $0x280] sm:$0xff]
    %v198 = vld [vmem:[#allocation8 + $0x288] sm:$0xff]
    %v199 = vld [vmem:[#allocation8 + $0x290] sm:$0xff]
    %v200 = vld [vmem:[#allocation8 + $0x298] sm:$0xff]
    %v201 = vld [vmem:[#allocation8 + $0x2a0] sm:$0xff]
    %v202 = vld [vmem:[#allocation8 + $0x2a8] sm:$0xff]
    %v203 = vld [vmem:[#allocation8 + $0x2b0] sm:$0xff]
    %v204 = vld [vmem:[#allocation8 + $0x2b8] sm:$0xff]
    %v205 = vld [vmem:[#allocation8 + $0x2c0] sm:$0xff]
    %v206 = vld [vmem:[#allocation8 + $0x2c8] sm:$0xff]
    %v207 = vld [vmem:[#allocation8 + $0x2d0] sm:$0xff]
    %v208 = vld [vmem:[#allocation8 + $0x2d8] sm:$0xff]
    %v209 = vld [vmem:[#allocation8 + $0x2e0] sm:$0xff]
    %v210 = vld [vmem:[#allocation8 + $0x2e8] sm:$0xff]
    %v211 = vld [vmem:[#allocation8 + $0x2f0] sm:$0xff]
    %v212 = vld [vmem:[#allocation8 + $0x2f8] sm:$0xff]
    %v213 = vld [vmem:[#allocation8 + $0x300] sm:$0xff]
    %v214 = vld [vmem:[#allocation8 + $0x308] sm:$0xff]
    %v215 = vld [vmem:[#allocation8 + $0x310] sm:$0xff]
    %v216 = vld [vmem:[#allocation8 + $0x318] sm:$0xff]
    %v217 = vld [vmem:[#allocation8 + $0x320] sm:$0xff]
    %v218 = vld [vmem:[#allocation8 + $0x328] sm:$0xff]
    %v219 = vld [vmem:[#allocation8 + $0x330] sm:$0xff]
    %v220 = vld [vmem:[#allocation8 + $0x338] sm:$0xff]
    %v221 = vld [vmem:[#allocation8 + $0x340] sm:$0xff]
    %v222 = vld [vmem:[#allocation8 + $0x348] sm:$0xff]
    %v223 = vld [vmem:[#allocation8 + $0x350] sm:$0xff]
    %v224 = vld [vmem:[#allocation8 + $0x358] sm:$0xff]
    %v225 = vld [vmem:[#allocation8 + $0x360] sm:$0xff]
    %v226 = vld [vmem:[#allocation8 + $0x368] sm:$0xff]
    %v227 = vld [vmem:[#allocation8 + $0x370] sm:$0xff]
    %v228 = vld [vmem:[#allocation8 + $0x378] sm:$0xff]
    %v229 = vld [vmem:[#allocation8 + $0x380] sm:$0xff]
    %v230 = vld [vmem:[#allocation8 + $0x388] sm:$0xff]
    %v231 = vld [vmem:[#allocation8 + $0x390] sm:$0xff]
    %v232 = vld [vmem:[#allocation8 + $0x398] sm:$0xff]
    %v233 = vld [vmem:[#allocation8 + $0x3a0] sm:$0xff]
    %v234 = vld [vmem:[#allocation8 + $0x3a8] sm:$0xff]
    %v235 = vld [vmem:[#allocation8 + $0x3b0] sm:$0xff]
    %v236 = vld [vmem:[#allocation8 + $0x3b8] sm:$0xff]
    %v237 = vld [vmem:[#allocation8 + $0x3c0] sm:$0xff]
    %v238 = vld [vmem:[#allocation8 + $0x3c8] sm:$0xff]
    %v239 = vld [vmem:[#allocation8 + $0x3d0] sm:$0xff]
    %v240 = vld [vmem:[#allocation8 + $0x3d8] sm:$0xff]
    %v241 = vld [vmem:[#allocation8 + $0x3e0] sm:$0xff]
    %v242 = vld [vmem:[#allocation8 + $0x3e8] sm:$0xff]
    %v243 = vld [vmem:[#allocation8 + $0x3f0] sm:$0xff]
    %v244 = vld [vmem:[#allocation8 + $0x3f8] sm:$0xff]
    %v245 = vld [vmem:[#allocation5] sm:$0xff]
    %v246 = vld [vmem:[#allocation5 + $0x8] sm:$0xff]
    %v247 = vpack.c.bf16 %v245, %v245
    %v248 = vpack.c.bf16 %v246, %v246
    %v249 = vld [vmem:[#allocation10] sm:$0xff]
    %v250 = vld [vmem:[#allocation10 + $0x8] sm:$0xff]
    %v251 = vld [vmem:[#allocation10 + $0x10] sm:$0xff]
    %v252 = vld [vmem:[#allocation10 + $0x18] sm:$0xff]
    %v253 = vld [vmem:[#allocation10 + $0x20] sm:$0xff]
    %v254 = vld [vmem:[#allocation10 + $0x28] sm:$0xff]
    %v255 = vld [vmem:[#allocation10 + $0x30] sm:$0xff]
    %v256 = vld [vmem:[#allocation10 + $0x38] sm:$0xff]
    %v257 = vld [vmem:[#allocation10 + $0x40] sm:$0xff]
    %v258 = vld [vmem:[#allocation10 + $0x48] sm:$0xff]
    %v259 = vld [vmem:[#allocation10 + $0x50] sm:$0xff]
    %v260 = vld [vmem:[#allocation10 + $0x58] sm:$0xff]
    %v261 = vld [vmem:[#allocation10 + $0x60] sm:$0xff]
    %v262 = vld [vmem:[#allocation10 + $0x68] sm:$0xff]
    %v263 = vld [vmem:[#allocation10 + $0x70] sm:$0xff]
    %v264 = vld [vmem:[#allocation10 + $0x78] sm:$0xff]
    %v265 = vld [vmem:[#allocation10 + $0x80] sm:$0xff]
    %v266 = vld [vmem:[#allocation10 + $0x88] sm:$0xff]
    %v267 = vld [vmem:[#allocation10 + $0x90] sm:$0xff]
    %v268 = vld [vmem:[#allocation10 + $0x98] sm:$0xff]
    %v269 = vld [vmem:[#allocation10 + $0xa0] sm:$0xff]
    %v270 = vld [vmem:[#allocation10 + $0xa8] sm:$0xff]
    %v271 = vld [vmem:[#allocation10 + $0xb0] sm:$0xff]
    %v272 = vld [vmem:[#allocation10 + $0xb8] sm:$0xff]
    %v273 = vld [vmem:[#allocation10 + $0xc0] sm:$0xff]
    %v274 = vld [vmem:[#allocation10 + $0xc8] sm:$0xff]
    %v275 = vld [vmem:[#allocation10 + $0xd0] sm:$0xff]
    %v276 = vld [vmem:[#allocation10 + $0xd8] sm:$0xff]
    %v277 = vld [vmem:[#allocation10 + $0xe0] sm:$0xff]
    %v278 = vld [vmem:[#allocation10 + $0xe8] sm:$0xff]
    %v279 = vld [vmem:[#allocation10 + $0xf0] sm:$0xff]
    %v280 = vld [vmem:[#allocation10 + $0xf8] sm:$0xff]
    %v281 = vld [vmem:[#allocation10 + $0x100] sm:$0xff]
    %v282 = vld [vmem:[#allocation10 + $0x108] sm:$0xff]
    %v283 = vld [vmem:[#allocation10 + $0x110] sm:$0xff]
    %v284 = vld [vmem:[#allocation10 + $0x118] sm:$0xff]
    %v285 = vld [vmem:[#allocation10 + $0x120] sm:$0xff]
    %v286 = vld [vmem:[#allocation10 + $0x128] sm:$0xff]
    %v287 = vld [vmem:[#allocation10 + $0x130] sm:$0xff]
    %v288 = vld [vmem:[#allocation10 + $0x138] sm:$0xff]
    %v289 = vld [vmem:[#allocation10 + $0x140] sm:$0xff]
    %v290 = vld [vmem:[#allocation10 + $0x148] sm:$0xff]
    %v291 = vld [vmem:[#allocation10 + $0x150] sm:$0xff]
    %v292 = vld [vmem:[#allocation10 + $0x158] sm:$0xff]
    %v293 = vld [vmem:[#allocation10 + $0x160] sm:$0xff]
    %v294 = vld [vmem:[#allocation10 + $0x168] sm:$0xff]
    %v295 = vld [vmem:[#allocation10 + $0x170] sm:$0xff]
    %v296 = vld [vmem:[#allocation10 + $0x178] sm:$0xff]
    %v297 = vld [vmem:[#allocation10 + $0x180] sm:$0xff]
    %v298 = vld [vmem:[#allocation10 + $0x188] sm:$0xff]
    %v299 = vld [vmem:[#allocation10 + $0x190] sm:$0xff]
    %v300 = vld [vmem:[#allocation10 + $0x198] sm:$0xff]
    %v301 = vld [vmem:[#allocation10 + $0x1a0] sm:$0xff]
    %v302 = vld [vmem:[#allocation10 + $0x1a8] sm:$0xff]
    %v303 = vld [vmem:[#allocation10 + $0x1b0] sm:$0xff]
    %v304 = vld [vmem:[#allocation10 + $0x1b8] sm:$0xff]
    %v305 = vld [vmem:[#allocation10 + $0x1c0] sm:$0xff]
    %v306 = vld [vmem:[#allocation10 + $0x1c8] sm:$0xff]
    %v307 = vld [vmem:[#allocation10 + $0x1d0] sm:$0xff]
    %v308 = vld [vmem:[#allocation10 + $0x1d8] sm:$0xff]
    %v309 = vld [vmem:[#allocation10 + $0x1e0] sm:$0xff]
    %v310 = vld [vmem:[#allocation10 + $0x1e8] sm:$0xff]
    %v311 = vld [vmem:[#allocation10 + $0x1f0] sm:$0xff]
    %v312 = vld [vmem:[#allocation10 + $0x1f8] sm:$0xff]
    %v313 = vld [vmem:[#allocation10 + $0x200] sm:$0xff]
    %v314 = vld [vmem:[#allocation10 + $0x208] sm:$0xff]
    %v315 = vld [vmem:[#allocation10 + $0x210] sm:$0xff]
    %v316 = vld [vmem:[#allocation10 + $0x218] sm:$0xff]
    %v317 = vld [vmem:[#allocation10 + $0x220] sm:$0xff]
    %v318 = vld [vmem:[#allocation10 + $0x228] sm:$0xff]
    %v319 = vld [vmem:[#allocation10 + $0x230] sm:$0xff]
    %v320 = vld [vmem:[#allocation10 + $0x238] sm:$0xff]
    %v321 = vld [vmem:[#allocation10 + $0x240] sm:$0xff]
    %v322 = vld [vmem:[#allocation10 + $0x248] sm:$0xff]
    %v323 = vld [vmem:[#allocation10 + $0x250] sm:$0xff]
    %v324 = vld [vmem:[#allocation10 + $0x258] sm:$0xff]
    %v325 = vld [vmem:[#allocation10 + $0x260] sm:$0xff]
    %v326 = vld [vmem:[#allocation10 + $0x268] sm:$0xff]
    %v327 = vld [vmem:[#allocation10 + $0x270] sm:$0xff]
    %v328 = vld [vmem:[#allocation10 + $0x278] sm:$0xff]
    %v329 = vld [vmem:[#allocation10 + $0x280] sm:$0xff]
    %v330 = vld [vmem:[#allocation10 + $0x288] sm:$0xff]
    %v331 = vld [vmem:[#allocation10 + $0x290] sm:$0xff]
    %v332 = vld [vmem:[#allocation10 + $0x298] sm:$0xff]
    %v333 = vld [vmem:[#allocation10 + $0x2a0] sm:$0xff]
    %v334 = vld [vmem:[#allocation10 + $0x2a8] sm:$0xff]
    %v335 = vld [vmem:[#allocation10 + $0x2b0] sm:$0xff]
    %v336 = vld [vmem:[#allocation10 + $0x2b8] sm:$0xff]
    %v337 = vld [vmem:[#allocation10 + $0x2c0] sm:$0xff]
    %v338 = vld [vmem:[#allocation10 + $0x2c8] sm:$0xff]
    %v339 = vld [vmem:[#allocation10 + $0x2d0] sm:$0xff]
    %v340 = vld [vmem:[#allocation10 + $0x2d8] sm:$0xff]
    %v341 = vld [vmem:[#allocation10 + $0x2e0] sm:$0xff]
    %v342 = vld [vmem:[#allocation10 + $0x2e8] sm:$0xff]
    %v343 = vld [vmem:[#allocation10 + $0x2f0] sm:$0xff]
    %v344 = vld [vmem:[#allocation10 + $0x2f8] sm:$0xff]
    %v345 = vld [vmem:[#allocation10 + $0x300] sm:$0xff]
    %v346 = vld [vmem:[#allocation10 + $0x308] sm:$0xff]
    %v347 = vld [vmem:[#allocation10 + $0x310] sm:$0xff]
    %v348 = vld [vmem:[#allocation10 + $0x318] sm:$0xff]
    %v349 = vld [vmem:[#allocation10 + $0x320] sm:$0xff]
    %v350 = vld [vmem:[#allocation10 + $0x328] sm:$0xff]
    %v351 = vld [vmem:[#allocation10 + $0x330] sm:$0xff]
    %v352 = vld [vmem:[#allocation10 + $0x338] sm:$0xff]
    %v353 = vld [vmem:[#allocation10 + $0x340] sm:$0xff]
    %v354 = vld [vmem:[#allocation10 + $0x348] sm:$0xff]
    %v355 = vld [vmem:[#allocation10 + $0x350] sm:$0xff]
    %v356 = vld [vmem:[#allocation10 + $0x358] sm:$0xff]
    %v357 = vld [vmem:[#allocation10 + $0x360] sm:$0xff]
    %v358 = vld [vmem:[#allocation10 + $0x368] sm:$0xff]
    %v359 = vld [vmem:[#allocation10 + $0x370] sm:$0xff]
    %v360 = vld [vmem:[#allocation10 + $0x378] sm:$0xff]
    %v361 = vld [vmem:[#allocation10 + $0x380] sm:$0xff]
    %v362 = vld [vmem:[#allocation10 + $0x388] sm:$0xff]
    %v363 = vld [vmem:[#allocation10 + $0x390] sm:$0xff]
    %v364 = vld [vmem:[#allocation10 + $0x398] sm:$0xff]
    %v365 = vld [vmem:[#allocation10 + $0x3a0] sm:$0xff]
    %v366 = vld [vmem:[#allocation10 + $0x3a8] sm:$0xff]
    %v367 = vld [vmem:[#allocation10 + $0x3b0] sm:$0xff]
    %v368 = vld [vmem:[#allocation10 + $0x3b8] sm:$0xff]
    %v369 = vld [vmem:[#allocation10 + $0x3c0] sm:$0xff]
    %v370 = vld [vmem:[#allocation10 + $0x3c8] sm:$0xff]
    %v371 = vld [vmem:[#allocation10 + $0x3d0] sm:$0xff]
    %v372 = vld [vmem:[#allocation10 + $0x3d8] sm:$0xff]
    %v373 = vld [vmem:[#allocation10 + $0x3e0] sm:$0xff]
    %v374 = vld [vmem:[#allocation10 + $0x3e8] sm:$0xff]
    %v375 = vld [vmem:[#allocation10 + $0x3f0] sm:$0xff]
    %v376 = vld [vmem:[#allocation10 + $0x3f8] sm:$0xff]
    %v505 = vunpack.c.l.b16 %v249
    %v506 = vunpack.c.h.b16 %v249
    %v507 = vunpack.c.l.b16 %v250
    %v508 = vunpack.c.h.b16 %v250
    %v509 = vunpack.c.l.b16 %v251
    %v510 = vunpack.c.h.b16 %v251
    %v511 = vunpack.c.l.b16 %v252
    %v512 = vunpack.c.h.b16 %v252
    %v513 = vunpack.c.l.b16 %v253
    %v514 = vunpack.c.h.b16 %v253
    %v515 = vunpack.c.l.b16 %v254
    %v516 = vunpack.c.h.b16 %v254
    %v517 = vunpack.c.l.b16 %v255
    %v518 = vunpack.c.h.b16 %v255
    %v519 = vunpack.c.l.b16 %v256
    %v520 = vunpack.c.h.b16 %v256
    %v521 = vunpack.c.l.b16 %v257
    %v522 = vunpack.c.h.b16 %v257
    %v523 = vunpack.c.l.b16 %v258
    %v524 = vunpack.c.h.b16 %v258
    %v525 = vunpack.c.l.b16 %v259
    %v526 = vunpack.c.h.b16 %v259
    %v527 = vunpack.c.l.b16 %v260
    %v528 = vunpack.c.h.b16 %v260
    %v529 = vunpack.c.l.b16 %v261
    %v530 = vunpack.c.h.b16 %v261
    %v531 = vunpack.c.l.b16 %v262
    %v532 = vunpack.c.h.b16 %v262
    %v533 = vunpack.c.l.b16 %v263
    %v534 = vunpack.c.h.b16 %v263
    %v535 = vunpack.c.l.b16 %v264
    %v536 = vunpack.c.h.b16 %v264
    %v537 = vunpack.c.l.b16 %v265
    %v538 = vunpack.c.h.b16 %v265
    %v539 = vunpack.c.l.b16 %v266
    %v540 = vunpack.c.h.b16 %v266
    %v541 = vunpack.c.l.b16 %v267
    %v542 = vunpack.c.h.b16 %v267
    %v543 = vunpack.c.l.b16 %v268
    %v544 = vunpack.c.h.b16 %v268
    %v545 = vunpack.c.l.b16 %v269
    %v546 = vunpack.c.h.b16 %v269
    %v547 = vunpack.c.l.b16 %v270
    %v548 = vunpack.c.h.b16 %v270
    %v549 = vunpack.c.l.b16 %v271
    %v550 = vunpack.c.h.b16 %v271
    %v551 = vunpack.c.l.b16 %v272
    %v552 = vunpack.c.h.b16 %v272
    %v553 = vunpack.c.l.b16 %v273
    %v554 = vunpack.c.h.b16 %v273
    %v555 = vunpack.c.l.b16 %v274
    %v556 = vunpack.c.h.b16 %v274
    %v557 = vunpack.c.l.b16 %v275
    %v558 = vunpack.c.h.b16 %v275
    %v559 = vunpack.c.l.b16 %v276
    %v560 = vunpack.c.h.b16 %v276
    %v561 = vunpack.c.l.b16 %v277
    %v562 = vunpack.c.h.b16 %v277
    %v563 = vunpack.c.l.b16 %v278
    %v564 = vunpack.c.h.b16 %v278
    %v565 = vunpack.c.l.b16 %v279
    %v566 = vunpack.c.h.b16 %v279
    %v567 = vunpack.c.l.b16 %v280
    %v568 = vunpack.c.h.b16 %v280
    %v569 = vunpack.c.l.b16 %v281
    %v570 = vunpack.c.h.b16 %v281
    %v571 = vunpack.c.l.b16 %v282
    %v572 = vunpack.c.h.b16 %v282
    %v573 = vunpack.c.l.b16 %v283
    %v574 = vunpack.c.h.b16 %v283
    %v575 = vunpack.c.l.b16 %v284
    %v576 = vunpack.c.h.b16 %v284
    %v577 = vunpack.c.l.b16 %v285
    %v578 = vunpack.c.h.b16 %v285
    %v579 = vunpack.c.l.b16 %v286
    %v580 = vunpack.c.h.b16 %v286
    %v581 = vunpack.c.l.b16 %v287
    %v582 = vunpack.c.h.b16 %v287
    %v583 = vunpack.c.l.b16 %v288
    %v584 = vunpack.c.h.b16 %v288
    %v585 = vunpack.c.l.b16 %v289
    %v586 = vunpack.c.h.b16 %v289
    %v587 = vunpack.c.l.b16 %v290
    %v588 = vunpack.c.h.b16 %v290
    %v589 = vunpack.c.l.b16 %v291
    %v590 = vunpack.c.h.b16 %v291
    %v591 = vunpack.c.l.b16 %v292
    %v592 = vunpack.c.h.b16 %v292
    %v593 = vunpack.c.l.b16 %v293
    %v594 = vunpack.c.h.b16 %v293
    %v595 = vunpack.c.l.b16 %v294
    %v596 = vunpack.c.h.b16 %v294
    %v597 = vunpack.c.l.b16 %v295
    %v598 = vunpack.c.h.b16 %v295
    %v599 = vunpack.c.l.b16 %v296
    %v600 = vunpack.c.h.b16 %v296
    %v601 = vunpack.c.l.b16 %v297
    %v602 = vunpack.c.h.b16 %v297
    %v603 = vunpack.c.l.b16 %v298
    %v604 = vunpack.c.h.b16 %v298
    %v605 = vunpack.c.l.b16 %v299
    %v606 = vunpack.c.h.b16 %v299
    %v607 = vunpack.c.l.b16 %v300
    %v608 = vunpack.c.h.b16 %v300
    %v609 = vunpack.c.l.b16 %v301
    %v610 = vunpack.c.h.b16 %v301
    %v611 = vunpack.c.l.b16 %v302
    %v612 = vunpack.c.h.b16 %v302
    %v613 = vunpack.c.l.b16 %v303
    %v614 = vunpack.c.h.b16 %v303
    %v615 = vunpack.c.l.b16 %v304
    %v616 = vunpack.c.h.b16 %v304
    %v617 = vunpack.c.l.b16 %v305
    %v618 = vunpack.c.h.b16 %v305
    %v619 = vunpack.c.l.b16 %v306
    %v620 = vunpack.c.h.b16 %v306
    %v621 = vunpack.c.l.b16 %v307
    %v622 = vunpack.c.h.b16 %v307
    %v623 = vunpack.c.l.b16 %v308
    %v624 = vunpack.c.h.b16 %v308
    %v625 = vunpack.c.l.b16 %v309
    %v626 = vunpack.c.h.b16 %v309
    %v627 = vunpack.c.l.b16 %v310
    %v628 = vunpack.c.h.b16 %v310
    %v629 = vunpack.c.l.b16 %v311
    %v630 = vunpack.c.h.b16 %v311
    %v631 = vunpack.c.l.b16 %v312
    %v632 = vunpack.c.h.b16 %v312
    %v633 = vunpack.c.l.b16 %v313
    %v634 = vunpack.c.h.b16 %v313
    %v635 = vunpack.c.l.b16 %v314
    %v636 = vunpack.c.h.b16 %v314
    %v637 = vunpack.c.l.b16 %v315
    %v638 = vunpack.c.h.b16 %v315
    %v639 = vunpack.c.l.b16 %v316
    %v640 = vunpack.c.h.b16 %v316
    %v641 = vunpack.c.l.b16 %v317
    %v642 = vunpack.c.h.b16 %v317
    %v643 = vunpack.c.l.b16 %v318
    %v644 = vunpack.c.h.b16 %v318
    %v645 = vunpack.c.l.b16 %v319
    %v646 = vunpack.c.h.b16 %v319
    %v647 = vunpack.c.l.b16 %v320
    %v648 = vunpack.c.h.b16 %v320
    %v649 = vunpack.c.l.b16 %v321
    %v650 = vunpack.c.h.b16 %v321
    %v651 = vunpack.c.l.b16 %v322
    %v652 = vunpack.c.h.b16 %v322
    %v653 = vunpack.c.l.b16 %v323
    %v654 = vunpack.c.h.b16 %v323
    %v655 = vunpack.c.l.b16 %v324
    %v656 = vunpack.c.h.b16 %v324
    %v657 = vunpack.c.l.b16 %v325
    %v658 = vunpack.c.h.b16 %v325
    %v659 = vunpack.c.l.b16 %v326
    %v660 = vunpack.c.h.b16 %v326
    %v661 = vunpack.c.l.b16 %v327
    %v662 = vunpack.c.h.b16 %v327
    %v663 = vunpack.c.l.b16 %v328
    %v664 = vunpack.c.h.b16 %v328
    %v665 = vunpack.c.l.b16 %v329
    %v666 = vunpack.c.h.b16 %v329
    %v667 = vunpack.c.l.b16 %v330
    %v668 = vunpack.c.h.b16 %v330
    %v669 = vunpack.c.l.b16 %v331
    %v670 = vunpack.c.h.b16 %v331
    %v671 = vunpack.c.l.b16 %v332
    %v672 = vunpack.c.h.b16 %v332
    %v673 = vunpack.c.l.b16 %v333
    %v674 = vunpack.c.h.b16 %v333
    %v675 = vunpack.c.l.b16 %v334
    %v676 = vunpack.c.h.b16 %v334
    %v677 = vunpack.c.l.b16 %v335
    %v678 = vunpack.c.h.b16 %v335
    %v679 = vunpack.c.l.b16 %v336
    %v680 = vunpack.c.h.b16 %v336
    %v681 = vunpack.c.l.b16 %v337
    %v682 = vunpack.c.h.b16 %v337
    %v683 = vunpack.c.l.b16 %v338
    %v684 = vunpack.c.h.b16 %v338
    %v685 = vunpack.c.l.b16 %v339
    %v686 = vunpack.c.h.b16 %v339
    %v687 = vunpack.c.l.b16 %v340
    %v688 = vunpack.c.h.b16 %v340
    %v689 = vunpack.c.l.b16 %v341
    %v690 = vunpack.c.h.b16 %v341
    %v691 = vunpack.c.l.b16 %v342
    %v692 = vunpack.c.h.b16 %v342
    %v693 = vunpack.c.l.b16 %v343
    %v694 = vunpack.c.h.b16 %v343
    %v695 = vunpack.c.l.b16 %v344
    %v696 = vunpack.c.h.b16 %v344
    %v697 = vunpack.c.l.b16 %v345
    %v698 = vunpack.c.h.b16 %v345
    %v699 = vunpack.c.l.b16 %v346
    %v700 = vunpack.c.h.b16 %v346
    %v701 = vunpack.c.l.b16 %v347
    %v702 = vunpack.c.h.b16 %v347
    %v703 = vunpack.c.l.b16 %v348
    %v704 = vunpack.c.h.b16 %v348
    %v705 = vunpack.c.l.b16 %v349
    %v706 = vunpack.c.h.b16 %v349
    %v707 = vunpack.c.l.b16 %v350
    %v708 = vunpack.c.h.b16 %v350
    %v709 = vunpack.c.l.b16 %v351
    %v710 = vunpack.c.h.b16 %v351
    %v711 = vunpack.c.l.b16 %v352
    %v712 = vunpack.c.h.b16 %v352
    %v713 = vunpack.c.l.b16 %v353
    %v714 = vunpack.c.h.b16 %v353
    %v715 = vunpack.c.l.b16 %v354
    %v716 = vunpack.c.h.b16 %v354
    %v717 = vunpack.c.l.b16 %v355
    %v718 = vunpack.c.h.b16 %v355
    %v719 = vunpack.c.l.b16 %v356
    %v720 = vunpack.c.h.b16 %v356
    %v721 = vunpack.c.l.b16 %v357
    %v722 = vunpack.c.h.b16 %v357
    %v723 = vunpack.c.l.b16 %v358
    %v724 = vunpack.c.h.b16 %v358
    %v725 = vunpack.c.l.b16 %v359
    %v726 = vunpack.c.h.b16 %v359
    %v727 = vunpack.c.l.b16 %v360
    %v728 = vunpack.c.h.b16 %v360
    %v729 = vunpack.c.l.b16 %v361
    %v730 = vunpack.c.h.b16 %v361
    %v731 = vunpack.c.l.b16 %v362
    %v732 = vunpack.c.h.b16 %v362
    %v733 = vunpack.c.l.b16 %v363
    %v734 = vunpack.c.h.b16 %v363
    %v735 = vunpack.c.l.b16 %v364
    %v736 = vunpack.c.h.b16 %v364
    %v737 = vunpack.c.l.b16 %v365
    %v738 = vunpack.c.h.b16 %v365
    %v739 = vunpack.c.l.b16 %v366
    %v740 = vunpack.c.h.b16 %v366
    %v741 = vunpack.c.l.b16 %v367
    %v742 = vunpack.c.h.b16 %v367
    %v743 = vunpack.c.l.b16 %v368
    %v744 = vunpack.c.h.b16 %v368
    %v745 = vunpack.c.l.b16 %v369
    %v746 = vunpack.c.h.b16 %v369
    %v747 = vunpack.c.l.b16 %v370
    %v748 = vunpack.c.h.b16 %v370
    %v749 = vunpack.c.l.b16 %v371
    %v750 = vunpack.c.h.b16 %v371
    %v751 = vunpack.c.l.b16 %v372
    %v752 = vunpack.c.h.b16 %v372
    %v753 = vunpack.c.l.b16 %v373
    %v754 = vunpack.c.h.b16 %v373
    %v755 = vunpack.c.l.b16 %v374
    %v756 = vunpack.c.h.b16 %v374
    %v757 = vunpack.c.l.b16 %v375
    %v758 = vunpack.c.h.b16 %v375
    %v759 = vunpack.c.l.b16 %v376
    %v760 = vunpack.c.h.b16 %v376
    %v761 = vpack.c.b16 %v513, %v505
    %v762 = vpack.c.b16 %v514, %v506
    %v763 = vpack.c.b16 %v515, %v507
    %v764 = vpack.c.b16 %v516, %v508
    %v765 = vpack.c.b16 %v517, %v509
    %v766 = vpack.c.b16 %v518, %v510
    %v767 = vpack.c.b16 %v519, %v511
    %v768 = vpack.c.b16 %v520, %v512
    %v769 = vpack.c.b16 %v529, %v521
    %v770 = vpack.c.b16 %v530, %v522
    %v771 = vpack.c.b16 %v531, %v523
    %v772 = vpack.c.b16 %v532, %v524
    %v773 = vpack.c.b16 %v533, %v525
    %v774 = vpack.c.b16 %v534, %v526
    %v775 = vpack.c.b16 %v535, %v527
    %v776 = vpack.c.b16 %v536, %v528
    %v777 = vpack.c.b16 %v545, %v537
    %v778 = vpack.c.b16 %v546, %v538
    %v779 = vpack.c.b16 %v547, %v539
    %v780 = vpack.c.b16 %v548, %v540
    %v781 = vpack.c.b16 %v549, %v541
    %v782 = vpack.c.b16 %v550, %v542
    %v783 = vpack.c.b16 %v551, %v543
    %v784 = vpack.c.b16 %v552, %v544
    %v785 = vpack.c.b16 %v561, %v553
    %v786 = vpack.c.b16 %v562, %v554
    %v787 = vpack.c.b16 %v563, %v555
    %v788 = vpack.c.b16 %v564, %v556
    %v789 = vpack.c.b16 %v565, %v557
    %v790 = vpack.c.b16 %v566, %v558
    %v791 = vpack.c.b16 %v567, %v559
    %v792 = vpack.c.b16 %v568, %v560
    %v793 = vpack.c.b16 %v577, %v569
    %v794 = vpack.c.b16 %v578, %v570
    %v795 = vpack.c.b16 %v579, %v571
    %v796 = vpack.c.b16 %v580, %v572
    %v797 = vpack.c.b16 %v581, %v573
    %v798 = vpack.c.b16 %v582, %v574
    %v799 = vpack.c.b16 %v583, %v575
    %v800 = vpack.c.b16 %v584, %v576
    %v801 = vpack.c.b16 %v593, %v585
    %v802 = vpack.c.b16 %v594, %v586
    %v803 = vpack.c.b16 %v595, %v587
    %v804 = vpack.c.b16 %v596, %v588
    %v805 = vpack.c.b16 %v597, %v589
    %v806 = vpack.c.b16 %v598, %v590
    %v807 = vpack.c.b16 %v599, %v591
    %v808 = vpack.c.b16 %v600, %v592
    %v809 = vpack.c.b16 %v609, %v601
    %v810 = vpack.c.b16 %v610, %v602
    %v811 = vpack.c.b16 %v611, %v603
    %v812 = vpack.c.b16 %v612, %v604
    %v813 = vpack.c.b16 %v613, %v605
    %v814 = vpack.c.b16 %v614, %v606
    %v815 = vpack.c.b16 %v615, %v607
    %v816 = vpack.c.b16 %v616, %v608
    %v817 = vpack.c.b16 %v625, %v617
    %v818 = vpack.c.b16 %v626, %v618
    %v819 = vpack.c.b16 %v627, %v619
    %v820 = vpack.c.b16 %v628, %v620
    %v821 = vpack.c.b16 %v629, %v621
    %v822 = vpack.c.b16 %v630, %v622
    %v823 = vpack.c.b16 %v631, %v623
    %v824 = vpack.c.b16 %v632, %v624
    %v825 = vpack.c.b16 %v641, %v633
    %v826 = vpack.c.b16 %v642, %v634
    %v827 = vpack.c.b16 %v643, %v635
    %v828 = vpack.c.b16 %v644, %v636
    %v829 = vpack.c.b16 %v645, %v637
    %v830 = vpack.c.b16 %v646, %v638
    %v831 = vpack.c.b16 %v647, %v639
    %v832 = vpack.c.b16 %v648, %v640
    %v833 = vpack.c.b16 %v657, %v649
    %v834 = vpack.c.b16 %v658, %v650
    %v835 = vpack.c.b16 %v659, %v651
    %v836 = vpack.c.b16 %v660, %v652
    %v837 = vpack.c.b16 %v661, %v653
    %v838 = vpack.c.b16 %v662, %v654
    %v839 = vpack.c.b16 %v663, %v655
    %v840 = vpack.c.b16 %v664, %v656
    %v841 = vpack.c.b16 %v673, %v665
    %v842 = vpack.c.b16 %v674, %v666
    %v843 = vpack.c.b16 %v675, %v667
    %v844 = vpack.c.b16 %v676, %v668
    %v845 = vpack.c.b16 %v677, %v669
    %v846 = vpack.c.b16 %v678, %v670
    %v847 = vpack.c.b16 %v679, %v671
    %v848 = vpack.c.b16 %v680, %v672
    %v849 = vpack.c.b16 %v689, %v681
    %v850 = vpack.c.b16 %v690, %v682
    %v851 = vpack.c.b16 %v691, %v683
    %v852 = vpack.c.b16 %v692, %v684
    %v853 = vpack.c.b16 %v693, %v685
    %v854 = vpack.c.b16 %v694, %v686
    %v855 = vpack.c.b16 %v695, %v687
    %v856 = vpack.c.b16 %v696, %v688
    %v857 = vpack.c.b16 %v705, %v697
    %v858 = vpack.c.b16 %v706, %v698
    %v859 = vpack.c.b16 %v707, %v699
    %v860 = vpack.c.b16 %v708, %v700
    %v861 = vpack.c.b16 %v709, %v701
    %v862 = vpack.c.b16 %v710, %v702
    %v863 = vpack.c.b16 %v711, %v703
    %v864 = vpack.c.b16 %v712, %v704
    %v865 = vpack.c.b16 %v721, %v713
    %v866 = vpack.c.b16 %v722, %v714
    %v867 = vpack.c.b16 %v723, %v715
    %v868 = vpack.c.b16 %v724, %v716
    %v869 = vpack.c.b16 %v725, %v717
    %v870 = vpack.c.b16 %v726, %v718
    %v871 = vpack.c.b16 %v727, %v719
    %v872 = vpack.c.b16 %v728, %v720
    %v873 = vpack.c.b16 %v737, %v729
    %v874 = vpack.c.b16 %v738, %v730
    %v875 = vpack.c.b16 %v739, %v731
    %v876 = vpack.c.b16 %v740, %v732
    %v877 = vpack.c.b16 %v741, %v733
    %v878 = vpack.c.b16 %v742, %v734
    %v879 = vpack.c.b16 %v743, %v735
    %v880 = vpack.c.b16 %v744, %v736
    %v881 = vpack.c.b16 %v753, %v745
    %v882 = vpack.c.b16 %v754, %v746
    %v883 = vpack.c.b16 %v755, %v747
    %v884 = vpack.c.b16 %v756, %v748
    %v885 = vpack.c.b16 %v757, %v749
    %v886 = vpack.c.b16 %v758, %v750
    %v887 = vpack.c.b16 %v759, %v751
    %v888 = vpack.c.b16 %v760, %v752
    %1017 = vmatpush.bf16.msra.mxu0 %v817
    %1018 = vmatpush.bf16.msra.mxu0 %v809
    %1019 = vmatpush.bf16.msra.mxu0 %v801
    %1020 = vmatpush.bf16.msra.mxu0 %v793
    %1021 = vmatpush.bf16.msra.mxu0 %v785
    %1022 = vmatpush.bf16.msra.mxu0 %v777
    %1023 = vmatpush.bf16.msra.mxu0 %v769
    %1024 = vmatpush.bf16.msra.mxu0 %v761
    %1025 = vmatmul.bf16.gmra.mxu0 %v247
    %v1026 = vpop.f32.mrf.mxu0
    %v1027 = vadd.f32 0.0, %v1026
    %v1028 = vpop.f32.mrf.mxu0
    %1029 = vdwg.mxu0
    %1030 = vmatpush.bf16.msra.mxu0 %v881
    %1031 = vmatpush.bf16.msra.mxu0 %v873
    %1032 = vmatpush.bf16.msra.mxu0 %v865
    %1033 = vmatpush.bf16.msra.mxu0 %v857
    %1034 = vmatpush.bf16.msra.mxu0 %v849
    %1035 = vmatpush.bf16.msra.mxu0 %v841
    %1036 = vmatpush.bf16.msra.mxu0 %v833
    %1037 = vmatpush.bf16.msra.mxu0 %v825
    %1038 = vmatmul.bf16.gmra.mxu0 %v248
    %v1039 = vpop.f32.mrf.mxu0
    %v1040 = vadd.f32 %v1027, %v1039
    %v1041 = vpop.f32.mrf.mxu0
    %1042 = vdwg.mxu0
    %1043 = vmatpush.bf16.msra.mxu0 %v818
    %1044 = vmatpush.bf16.msra.mxu0 %v810
    %1045 = vmatpush.bf16.msra.mxu0 %v802
    %1046 = vmatpush.bf16.msra.mxu0 %v794
    %1047 = vmatpush.bf16.msra.mxu0 %v786
    %1048 = vmatpush.bf16.msra.mxu0 %v778
    %1049 = vmatpush.bf16.msra.mxu0 %v770
    %1050 = vmatpush.bf16.msra.mxu0 %v762
    %1051 = vmatmul.bf16.gmra.mxu0 %v247
    %v1052 = vpop.f32.mrf.mxu0
    %v1053 = vadd.f32 0.0, %v1052
    %v1054 = vpop.f32.mrf.mxu0
    %1055 = vdwg.mxu0
    %1056 = vmatpush.bf16.msra.mxu0 %v882
    %1057 = vmatpush.bf16.msra.mxu0 %v874
    %1058 = vmatpush.bf16.msra.mxu0 %v866
    %1059 = vmatpush.bf16.msra.mxu0 %v858
    %1060 = vmatpush.bf16.msra.mxu0 %v850
    %1061 = vmatpush.bf16.msra.mxu0 %v842
    %1062 = vmatpush.bf16.msra.mxu0 %v834
    %1063 = vmatpush.bf16.msra.mxu0 %v826
    %1064 = vmatmul.bf16.gmra.mxu0 %v248
    %v1065 = vpop.f32.mrf.mxu0
    %v1066 = vadd.f32 %v1053, %v1065
    %v1067 = vpop.f32.mrf.mxu0
    %1068 = vdwg.mxu0
    %1069 = vmatpush.bf16.msra.mxu0 %v819
    %1070 = vmatpush.bf16.msra.mxu0 %v811
    %1071 = vmatpush.bf16.msra.mxu0 %v803
    %1072 = vmatpush.bf16.msra.mxu0 %v795
    %1073 = vmatpush.bf16.msra.mxu0 %v787
    %1074 = vmatpush.bf16.msra.mxu0 %v779
    %1075 = vmatpush.bf16.msra.mxu0 %v771
    %1076 = vmatpush.bf16.msra.mxu0 %v763
    %1077 = vmatmul.bf16.gmra.mxu0 %v247
    %v1078 = vpop.f32.mrf.mxu0
    %v1079 = vadd.f32 0.0, %v1078
    %v1080 = vpop.f32.mrf.mxu0
    %1081 = vdwg.mxu0
    %1082 = vmatpush.bf16.msra.mxu0 %v883
    %1083 = vmatpush.bf16.msra.mxu0 %v875
    %1084 = vmatpush.bf16.msra.mxu0 %v867
    %1085 = vmatpush.bf16.msra.mxu0 %v859
    %1086 = vmatpush.bf16.msra.mxu0 %v851
    %1087 = vmatpush.bf16.msra.mxu0 %v843
    %1088 = vmatpush.bf16.msra.mxu0 %v835
    %1089 = vmatpush.bf16.msra.mxu0 %v827
    %1090 = vmatmul.bf16.gmra.mxu0 %v248
    %v1091 = vpop.f32.mrf.mxu0
    %v1092 = vadd.f32 %v1079, %v1091
    %v1093 = vpop.f32.mrf.mxu0
    %1094 = vdwg.mxu0
    %1095 = vmatpush.bf16.msra.mxu0 %v820
    %1096 = vmatpush.bf16.msra.mxu0 %v812
    %1097 = vmatpush.bf16.msra.mxu0 %v804
    %1098 = vmatpush.bf16.msra.mxu0 %v796
    %1099 = vmatpush.bf16.msra.mxu0 %v788
    %1100 = vmatpush.bf16.msra.mxu0 %v780
    %1101 = vmatpush.bf16.msra.mxu0 %v772
    %1102 = vmatpush.bf16.msra.mxu0 %v764
    %1103 = vmatmul.bf16.gmra.mxu0 %v247
    %v1104 = vpop.f32.mrf.mxu0
    %v1105 = vadd.f32 0.0, %v1104
    %v1106 = vpop.f32.mrf.mxu0
    %1107 = vdwg.mxu0
    %1108 = vmatpush.bf16.msra.mxu0 %v884
    %1109 = vmatpush.bf16.msra.mxu0 %v876
    %1110 = vmatpush.bf16.msra.mxu0 %v868
    %1111 = vmatpush.bf16.msra.mxu0 %v860
    %1112 = vmatpush.bf16.msra.mxu0 %v852
    %1113 = vmatpush.bf16.msra.mxu0 %v844
    %1114 = vmatpush.bf16.msra.mxu0 %v836
    %1115 = vmatpush.bf16.msra.mxu0 %v828
    %1116 = vmatmul.bf16.gmra.mxu0 %v248
    %v1117 = vpop.f32.mrf.mxu0
    %v1118 = vadd.f32 %v1105, %v1117
    %v1119 = vpop.f32.mrf.mxu0
    %1120 = vdwg.mxu0
    %1121 = vmatpush.bf16.msra.mxu0 %v821
    %1122 = vmatpush.bf16.msra.mxu0 %v813
    %1123 = vmatpush.bf16.msra.mxu0 %v805
    %1124 = vmatpush.bf16.msra.mxu0 %v797
    %1125 = vmatpush.bf16.msra.mxu0 %v789
    %1126 = vmatpush.bf16.msra.mxu0 %v781
    %1127 = vmatpush.bf16.msra.mxu0 %v773
    %1128 = vmatpush.bf16.msra.mxu0 %v765
    %1129 = vmatmul.bf16.gmra.mxu0 %v247
    %v1130 = vpop.f32.mrf.mxu0
    %v1131 = vadd.f32 0.0, %v1130
    %v1132 = vpop.f32.mrf.mxu0
    %1133 = vdwg.mxu0
    %1134 = vmatpush.bf16.msra.mxu0 %v885
    %1135 = vmatpush.bf16.msra.mxu0 %v877
    %1136 = vmatpush.bf16.msra.mxu0 %v869
    %1137 = vmatpush.bf16.msra.mxu0 %v861
    %1138 = vmatpush.bf16.msra.mxu0 %v853
    %1139 = vmatpush.bf16.msra.mxu0 %v845
    %1140 = vmatpush.bf16.msra.mxu0 %v837
    %1141 = vmatpush.bf16.msra.mxu0 %v829
    %1142 = vmatmul.bf16.gmra.mxu0 %v248
    %v1143 = vpop.f32.mrf.mxu0
    %v1144 = vadd.f32 %v1131, %v1143
    %v1145 = vpop.f32.mrf.mxu0
    %1146 = vdwg.mxu0
    %1147 = vmatpush.bf16.msra.mxu0 %v822
    %1148 = vmatpush.bf16.msra.mxu0 %v814
    %1149 = vmatpush.bf16.msra.mxu0 %v806
    %1150 = vmatpush.bf16.msra.mxu0 %v798
    %1151 = vmatpush.bf16.msra.mxu0 %v790
    %1152 = vmatpush.bf16.msra.mxu0 %v782
    %1153 = vmatpush.bf16.msra.mxu0 %v774
    %1154 = vmatpush.bf16.msra.mxu0 %v766
    %1155 = vmatmul.bf16.gmra.mxu0 %v247
    %v1156 = vpop.f32.mrf.mxu0
    %v1157 = vadd.f32 0.0, %v1156
    %v1158 = vpop.f32.mrf.mxu0
    %1159 = vdwg.mxu0
    %1160 = vmatpush.bf16.msra.mxu0 %v886
    %1161 = vmatpush.bf16.msra.mxu0 %v878
    %1162 = vmatpush.bf16.msra.mxu0 %v870
    %1163 = vmatpush.bf16.msra.mxu0 %v862
    %1164 = vmatpush.bf16.msra.mxu0 %v854
    %1165 = vmatpush.bf16.msra.mxu0 %v846
    %1166 = vmatpush.bf16.msra.mxu0 %v838
    %1167 = vmatpush.bf16.msra.mxu0 %v830
    %1168 = vmatmul.bf16.gmra.mxu0 %v248
    %v1169 = vpop.f32.mrf.mxu0
    %v1170 = vadd.f32 %v1157, %v1169
    %v1171 = vpop.f32.mrf.mxu0
    %1172 = vdwg.mxu0
    %1173 = vmatpush.bf16.msra.mxu0 %v823
    %1174 = vmatpush.bf16.msra.mxu0 %v815
    %1175 = vmatpush.bf16.msra.mxu0 %v807
    %1176 = vmatpush.bf16.msra.mxu0 %v799
    %1177 = vmatpush.bf16.msra.mxu0 %v791
    %1178 = vmatpush.bf16.msra.mxu0 %v783
    %1179 = vmatpush.bf16.msra.mxu0 %v775
    %1180 = vmatpush.bf16.msra.mxu0 %v767
    %1181 = vmatmul.bf16.gmra.mxu0 %v247
    %v1182 = vpop.f32.mrf.mxu0
    %v1183 = vadd.f32 0.0, %v1182
    %v1184 = vpop.f32.mrf.mxu0
    %1185 = vdwg.mxu0
    %1186 = vmatpush.bf16.msra.mxu0 %v887
    %1187 = vmatpush.bf16.msra.mxu0 %v879
    %1188 = vmatpush.bf16.msra.mxu0 %v871
    %1189 = vmatpush.bf16.msra.mxu0 %v863
    %1190 = vmatpush.bf16.msra.mxu0 %v855
    %1191 = vmatpush.bf16.msra.mxu0 %v847
    %1192 = vmatpush.bf16.msra.mxu0 %v839
    %1193 = vmatpush.bf16.msra.mxu0 %v831
    %1194 = vmatmul.bf16.gmra.mxu0 %v248
    %v1195 = vpop.f32.mrf.mxu0
    %v1196 = vadd.f32 %v1183, %v1195
    %v1197 = vpop.f32.mrf.mxu0
    %1198 = vdwg.mxu0
    %1199 = vmatpush.bf16.msra.mxu0 %v824
    %1200 = vmatpush.bf16.msra.mxu0 %v816
    %1201 = vmatpush.bf16.msra.mxu0 %v808
    %1202 = vmatpush.bf16.msra.mxu0 %v800
    %1203 = vmatpush.bf16.msra.mxu0 %v792
    %1204 = vmatpush.bf16.msra.mxu0 %v784
    %1205 = vmatpush.bf16.msra.mxu0 %v776
    %1206 = vmatpush.bf16.msra.mxu0 %v768
    %1207 = vmatmul.bf16.gmra.mxu0 %v247
    %v1208 = vpop.f32.mrf.mxu0
    %v1209 = vadd.f32 0.0, %v1208
    %v1210 = vpop.f32.mrf.mxu0
    %1211 = vdwg.mxu0
    %1212 = vmatpush.bf16.msra.mxu0 %v888
    %1213 = vmatpush.bf16.msra.mxu0 %v880
    %1214 = vmatpush.bf16.msra.mxu0 %v872
    %1215 = vmatpush.bf16.msra.mxu0 %v864
    %1216 = vmatpush.bf16.msra.mxu0 %v856
    %1217 = vmatpush.bf16.msra.mxu0 %v848
    %1218 = vmatpush.bf16.msra.mxu0 %v840
    %1219 = vmatpush.bf16.msra.mxu0 %v832
    %1220 = vmatmul.bf16.gmra.mxu0 %v248
    %v1221 = vpop.f32.mrf.mxu0
    %v1222 = vadd.f32 %v1209, %v1221
    %v1223 = vpop.f32.mrf.mxu0
    %1224 = vdwg.mxu0
    %v1353 = vunpack.c.l.b16 %v117
    %v1354 = vunpack.c.h.b16 %v117
    %v1355 = vunpack.c.l.b16 %v118
    %v1356 = vunpack.c.h.b16 %v118
    %v1357 = vunpack.c.l.b16 %v119
    %v1358 = vunpack.c.h.b16 %v119
    %v1359 = vunpack.c.l.b16 %v120
    %v1360 = vunpack.c.h.b16 %v120
    %v1361 = vunpack.c.l.b16 %v121
    %v1362 = vunpack.c.h.b16 %v121
    %v1363 = vunpack.c.l.b16 %v122
    %v1364 = vunpack.c.h.b16 %v122
    %v1365 = vunpack.c.l.b16 %v123
    %v1366 = vunpack.c.h.b16 %v123
    %v1367 = vunpack.c.l.b16 %v124
    %v1368 = vunpack.c.h.b16 %v124
    %v1369 = vunpack.c.l.b16 %v125
    %v1370 = vunpack.c.h.b16 %v125
    %v1371 = vunpack.c.l.b16 %v126
    %v1372 = vunpack.c.h.b16 %v126
    %v1373 = vunpack.c.l.b16 %v127
    %v1374 = vunpack.c.h.b16 %v127
    %v1375 = vunpack.c.l.b16 %v128
    %v1376 = vunpack.c.h.b16 %v128
    %v1377 = vunpack.c.l.b16 %v129
    %v1378 = vunpack.c.h.b16 %v129
    %v1379 = vunpack.c.l.b16 %v130
    %v1380 = vunpack.c.h.b16 %v130
    %v1381 = vunpack.c.l.b16 %v131
    %v1382 = vunpack.c.h.b16 %v131
    %v1383 = vunpack.c.l.b16 %v132
    %v1384 = vunpack.c.h.b16 %v132
    %v1385 = vunpack.c.l.b16 %v133
    %v1386 = vunpack.c.h.b16 %v133
    %v1387 = vunpack.c.l.b16 %v134
    %v1388 = vunpack.c.h.b16 %v134
    %v1389 = vunpack.c.l.b16 %v135
    %v1390 = vunpack.c.h.b16 %v135
    %v1391 = vunpack.c.l.b16 %v136
    %v1392 = vunpack.c.h.b16 %v136
    %v1393 = vunpack.c.l.b16 %v137
    %v1394 = vunpack.c.h.b16 %v137
    %v1395 = vunpack.c.l.b16 %v138
    %v1396 = vunpack.c.h.b16 %v138
    %v1397 = vunpack.c.l.b16 %v139
    %v1398 = vunpack.c.h.b16 %v139
    %v1399 = vunpack.c.l.b16 %v140
    %v1400 = vunpack.c.h.b16 %v140
    %v1401 = vunpack.c.l.b16 %v141
    %v1402 = vunpack.c.h.b16 %v141
    %v1403 = vunpack.c.l.b16 %v142
    %v1404 = vunpack.c.h.b16 %v142
    %v1405 = vunpack.c.l.b16 %v143
    %v1406 = vunpack.c.h.b16 %v143
    %v1407 = vunpack.c.l.b16 %v144
    %v1408 = vunpack.c.h.b16 %v144
    %v1409 = vunpack.c.l.b16 %v145
    %v1410 = vunpack.c.h.b16 %v145
    %v1411 = vunpack.c.l.b16 %v146
    %v1412 = vunpack.c.h.b16 %v146
    %v1413 = vunpack.c.l.b16 %v147
    %v1414 = vunpack.c.h.b16 %v147
    %v1415 = vunpack.c.l.b16 %v148
    %v1416 = vunpack.c.h.b16 %v148
    %v1417 = vunpack.c.l.b16 %v149
    %v1418 = vunpack.c.h.b16 %v149
    %v1419 = vunpack.c.l.b16 %v150
    %v1420 = vunpack.c.h.b16 %v150
    %v1421 = vunpack.c.l.b16 %v151
    %v1422 = vunpack.c.h.b16 %v151
    %v1423 = vunpack.c.l.b16 %v152
    %v1424 = vunpack.c.h.b16 %v152
    %v1425 = vunpack.c.l.b16 %v153
    %v1426 = vunpack.c.h.b16 %v153
    %v1427 = vunpack.c.l.b16 %v154
    %v1428 = vunpack.c.h.b16 %v154
    %v1429 = vunpack.c.l.b16 %v155
    %v1430 = vunpack.c.h.b16 %v155
    %v1431 = vunpack.c.l.b16 %v156
    %v1432 = vunpack.c.h.b16 %v156
    %v1433 = vunpack.c.l.b16 %v157
    %v1434 = vunpack.c.h.b16 %v157
    %v1435 = vunpack.c.l.b16 %v158
    %v1436 = vunpack.c.h.b16 %v158
    %v1437 = vunpack.c.l.b16 %v159
    %v1438 = vunpack.c.h.b16 %v159
    %v1439 = vunpack.c.l.b16 %v160
    %v1440 = vunpack.c.h.b16 %v160
    %v1441 = vunpack.c.l.b16 %v161
    %v1442 = vunpack.c.h.b16 %v161
    %v1443 = vunpack.c.l.b16 %v162
    %v1444 = vunpack.c.h.b16 %v162
    %v1445 = vunpack.c.l.b16 %v163
    %v1446 = vunpack.c.h.b16 %v163
    %v1447 = vunpack.c.l.b16 %v164
    %v1448 = vunpack.c.h.b16 %v164
    %v1449 = vunpack.c.l.b16 %v165
    %v1450 = vunpack.c.h.b16 %v165
    %v1451 = vunpack.c.l.b16 %v166
    %v1452 = vunpack.c.h.b16 %v166
    %v1453 = vunpack.c.l.b16 %v167
    %v1454 = vunpack.c.h.b16 %v167
    %v1455 = vunpack.c.l.b16 %v168
    %v1456 = vunpack.c.h.b16 %v168
    %v1457 = vunpack.c.l.b16 %v169
    %v1458 = vunpack.c.h.b16 %v169
    %v1459 = vunpack.c.l.b16 %v170
    %v1460 = vunpack.c.h.b16 %v170
    %v1461 = vunpack.c.l.b16 %v171
    %v1462 = vunpack.c.h.b16 %v171
    %v1463 = vunpack.c.l.b16 %v172
    %v1464 = vunpack.c.h.b16 %v172
    %v1465 = vunpack.c.l.b16 %v173
    %v1466 = vunpack.c.h.b16 %v173
    %v1467 = vunpack.c.l.b16 %v174
    %v1468 = vunpack.c.h.b16 %v174
    %v1469 = vunpack.c.l.b16 %v175
    %v1470 = vunpack.c.h.b16 %v175
    %v1471 = vunpack.c.l.b16 %v176
    %v1472 = vunpack.c.h.b16 %v176
    %v1473 = vunpack.c.l.b16 %v177
    %v1474 = vunpack.c.h.b16 %v177
    %v1475 = vunpack.c.l.b16 %v178
    %v1476 = vunpack.c.h.b16 %v178
    %v1477 = vunpack.c.l.b16 %v179
    %v1478 = vunpack.c.h.b16 %v179
    %v1479 = vunpack.c.l.b16 %v180
    %v1480 = vunpack.c.h.b16 %v180
    %v1481 = vunpack.c.l.b16 %v181
    %v1482 = vunpack.c.h.b16 %v181
    %v1483 = vunpack.c.l.b16 %v182
    %v1484 = vunpack.c.h.b16 %v182
    %v1485 = vunpack.c.l.b16 %v183
    %v1486 = vunpack.c.h.b16 %v183
    %v1487 = vunpack.c.l.b16 %v184
    %v1488 = vunpack.c.h.b16 %v184
    %v1489 = vunpack.c.l.b16 %v185
    %v1490 = vunpack.c.h.b16 %v185
    %v1491 = vunpack.c.l.b16 %v186
    %v1492 = vunpack.c.h.b16 %v186
    %v1493 = vunpack.c.l.b16 %v187
    %v1494 = vunpack.c.h.b16 %v187
    %v1495 = vunpack.c.l.b16 %v188
    %v1496 = vunpack.c.h.b16 %v188
    %v1497 = vunpack.c.l.b16 %v189
    %v1498 = vunpack.c.h.b16 %v189
    %v1499 = vunpack.c.l.b16 %v190
    %v1500 = vunpack.c.h.b16 %v190
    %v1501 = vunpack.c.l.b16 %v191
    %v1502 = vunpack.c.h.b16 %v191
    %v1503 = vunpack.c.l.b16 %v192
    %v1504 = vunpack.c.h.b16 %v192
    %v1505 = vunpack.c.l.b16 %v193
    %v1506 = vunpack.c.h.b16 %v193
    %v1507 = vunpack.c.l.b16 %v194
    %v1508 = vunpack.c.h.b16 %v194
    %v1509 = vunpack.c.l.b16 %v195
    %v1510 = vunpack.c.h.b16 %v195
    %v1511 = vunpack.c.l.b16 %v196
    %v1512 = vunpack.c.h.b16 %v196
    %v1513 = vunpack.c.l.b16 %v197
    %v1514 = vunpack.c.h.b16 %v197
    %v1515 = vunpack.c.l.b16 %v198
    %v1516 = vunpack.c.h.b16 %v198
    %v1517 = vunpack.c.l.b16 %v199
    %v1518 = vunpack.c.h.b16 %v199
    %v1519 = vunpack.c.l.b16 %v200
    %v1520 = vunpack.c.h.b16 %v200
    %v1521 = vunpack.c.l.b16 %v201
    %v1522 = vunpack.c.h.b16 %v201
    %v1523 = vunpack.c.l.b16 %v202
    %v1524 = vunpack.c.h.b16 %v202
    %v1525 = vunpack.c.l.b16 %v203
    %v1526 = vunpack.c.h.b16 %v203
    %v1527 = vunpack.c.l.b16 %v204
    %v1528 = vunpack.c.h.b16 %v204
    %v1529 = vunpack.c.l.b16 %v205
    %v1530 = vunpack.c.h.b16 %v205
    %v1531 = vunpack.c.l.b16 %v206
    %v1532 = vunpack.c.h.b16 %v206
    %v1533 = vunpack.c.l.b16 %v207
    %v1534 = vunpack.c.h.b16 %v207
    %v1535 = vunpack.c.l.b16 %v208
    %v1536 = vunpack.c.h.b16 %v208
    %v1537 = vunpack.c.l.b16 %v209
    %v1538 = vunpack.c.h.b16 %v209
    %v1539 = vunpack.c.l.b16 %v210
    %v1540 = vunpack.c.h.b16 %v210
    %v1541 = vunpack.c.l.b16 %v211
    %v1542 = vunpack.c.h.b16 %v211
    %v1543 = vunpack.c.l.b16 %v212
    %v1544 = vunpack.c.h.b16 %v212
    %v1545 = vunpack.c.l.b16 %v213
    %v1546 = vunpack.c.h.b16 %v213
    %v1547 = vunpack.c.l.b16 %v214
    %v1548 = vunpack.c.h.b16 %v214
    %v1549 = vunpack.c.l.b16 %v215
    %v1550 = vunpack.c.h.b16 %v215
    %v1551 = vunpack.c.l.b16 %v216
    %v1552 = vunpack.c.h.b16 %v216
    %v1553 = vunpack.c.l.b16 %v217
    %v1554 = vunpack.c.h.b16 %v217
    %v1555 = vunpack.c.l.b16 %v218
    %v1556 = vunpack.c.h.b16 %v218
    %v1557 = vunpack.c.l.b16 %v219
    %v1558 = vunpack.c.h.b16 %v219
    %v1559 = vunpack.c.l.b16 %v220
    %v1560 = vunpack.c.h.b16 %v220
    %v1561 = vunpack.c.l.b16 %v221
    %v1562 = vunpack.c.h.b16 %v221
    %v1563 = vunpack.c.l.b16 %v222
    %v1564 = vunpack.c.h.b16 %v222
    %v1565 = vunpack.c.l.b16 %v223
    %v1566 = vunpack.c.h.b16 %v223
    %v1567 = vunpack.c.l.b16 %v224
    %v1568 = vunpack.c.h.b16 %v224
    %v1569 = vunpack.c.l.b16 %v225
    %v1570 = vunpack.c.h.b16 %v225
    %v1571 = vunpack.c.l.b16 %v226
    %v1572 = vunpack.c.h.b16 %v226
    %v1573 = vunpack.c.l.b16 %v227
    %v1574 = vunpack.c.h.b16 %v227
    %v1575 = vunpack.c.l.b16 %v228
    %v1576 = vunpack.c.h.b16 %v228
    %v1577 = vunpack.c.l.b16 %v229
    %v1578 = vunpack.c.h.b16 %v229
    %v1579 = vunpack.c.l.b16 %v230
    %v1580 = vunpack.c.h.b16 %v230
    %v1581 = vunpack.c.l.b16 %v231
    %v1582 = vunpack.c.h.b16 %v231
    %v1583 = vunpack.c.l.b16 %v232
    %v1584 = vunpack.c.h.b16 %v232
    %v1585 = vunpack.c.l.b16 %v233
    %v1586 = vunpack.c.h.b16 %v233
    %v1587 = vunpack.c.l.b16 %v234
    %v1588 = vunpack.c.h.b16 %v234
    %v1589 = vunpack.c.l.b16 %v235
    %v1590 = vunpack.c.h.b16 %v235
    %v1591 = vunpack.c.l.b16 %v236
    %v1592 = vunpack.c.h.b16 %v236
    %v1593 = vunpack.c.l.b16 %v237
    %v1594 = vunpack.c.h.b16 %v237
    %v1595 = vunpack.c.l.b16 %v238
    %v1596 = vunpack.c.h.b16 %v238
    %v1597 = vunpack.c.l.b16 %v239
    %v1598 = vunpack.c.h.b16 %v239
    %v1599 = vunpack.c.l.b16 %v240
    %v1600 = vunpack.c.h.b16 %v240
    %v1601 = vunpack.c.l.b16 %v241
    %v1602 = vunpack.c.h.b16 %v241
    %v1603 = vunpack.c.l.b16 %v242
    %v1604 = vunpack.c.h.b16 %v242
    %v1605 = vunpack.c.l.b16 %v243
    %v1606 = vunpack.c.h.b16 %v243
    %v1607 = vunpack.c.l.b16 %v244
    %v1608 = vunpack.c.h.b16 %v244
    %v1609 = vpack.c.b16 %v1361, %v1353
    %v1610 = vpack.c.b16 %v1362, %v1354
    %v1611 = vpack.c.b16 %v1363, %v1355
    %v1612 = vpack.c.b16 %v1364, %v1356
    %v1613 = vpack.c.b16 %v1365, %v1357
    %v1614 = vpack.c.b16 %v1366, %v1358
    %v1615 = vpack.c.b16 %v1367, %v1359
    %v1616 = vpack.c.b16 %v1368, %v1360
    %v1617 = vpack.c.b16 %v1377, %v1369
    %v1618 = vpack.c.b16 %v1378, %v1370
    %v1619 = vpack.c.b16 %v1379, %v1371
    %v1620 = vpack.c.b16 %v1380, %v1372
    %v1621 = vpack.c.b16 %v1381, %v1373
    %v1622 = vpack.c.b16 %v1382, %v1374
    %v1623 = vpack.c.b16 %v1383, %v1375
    %v1624 = vpack.c.b16 %v1384, %v1376
    %v1625 = vpack.c.b16 %v1393, %v1385
    %v1626 = vpack.c.b16 %v1394, %v1386
    %v1627 = vpack.c.b16 %v1395, %v1387
    %v1628 = vpack.c.b16 %v1396, %v1388
    %v1629 = vpack.c.b16 %v1397, %v1389
    %v1630 = vpack.c.b16 %v1398, %v1390
    %v1631 = vpack.c.b16 %v1399, %v1391
    %v1632 = vpack.c.b16 %v1400, %v1392
    %v1633 = vpack.c.b16 %v1409, %v1401
    %v1634 = vpack.c.b16 %v1410, %v1402
    %v1635 = vpack.c.b16 %v1411, %v1403
    %v1636 = vpack.c.b16 %v1412, %v1404
    %v1637 = vpack.c.b16 %v1413, %v1405
    %v1638 = vpack.c.b16 %v1414, %v1406
    %v1639 = vpack.c.b16 %v1415, %v1407
    %v1640 = vpack.c.b16 %v1416, %v1408
    %v1641 = vpack.c.b16 %v1425, %v1417
    %v1642 = vpack.c.b16 %v1426, %v1418
    %v1643 = vpack.c.b16 %v1427, %v1419
    %v1644 = vpack.c.b16 %v1428, %v1420
    %v1645 = vpack.c.b16 %v1429, %v1421
    %v1646 = vpack.c.b16 %v1430, %v1422
    %v1647 = vpack.c.b16 %v1431, %v1423
    %v1648 = vpack.c.b16 %v1432, %v1424
    %v1649 = vpack.c.b16 %v1441, %v1433
    %v1650 = vpack.c.b16 %v1442, %v1434
    %v1651 = vpack.c.b16 %v1443, %v1435
    %v1652 = vpack.c.b16 %v1444, %v1436
    %v1653 = vpack.c.b16 %v1445, %v1437
    %v1654 = vpack.c.b16 %v1446, %v1438
    %v1655 = vpack.c.b16 %v1447, %v1439
    %v1656 = vpack.c.b16 %v1448, %v1440
    %v1657 = vpack.c.b16 %v1457, %v1449
    %v1658 = vpack.c.b16 %v1458, %v1450
    %v1659 = vpack.c.b16 %v1459, %v1451
    %v1660 = vpack.c.b16 %v1460, %v1452
    %v1661 = vpack.c.b16 %v1461, %v1453
    %v1662 = vpack.c.b16 %v1462, %v1454
    %v1663 = vpack.c.b16 %v1463, %v1455
    %v1664 = vpack.c.b16 %v1464, %v1456
    %v1665 = vpack.c.b16 %v1473, %v1465
    %v1666 = vpack.c.b16 %v1474, %v1466
    %v1667 = vpack.c.b16 %v1475, %v1467
    %v1668 = vpack.c.b16 %v1476, %v1468
    %v1669 = vpack.c.b16 %v1477, %v1469
    %v1670 = vpack.c.b16 %v1478, %v1470
    %v1671 = vpack.c.b16 %v1479, %v1471
    %v1672 = vpack.c.b16 %v1480, %v1472
    %v1673 = vpack.c.b16 %v1489, %v1481
    %v1674 = vpack.c.b16 %v1490, %v1482
    %v1675 = vpack.c.b16 %v1491, %v1483
    %v1676 = vpack.c.b16 %v1492, %v1484
    %v1677 = vpack.c.b16 %v1493, %v1485
    %v1678 = vpack.c.b16 %v1494, %v1486
    %v1679 = vpack.c.b16 %v1495, %v1487
    %v1680 = vpack.c.b16 %v1496, %v1488
    %v1681 = vpack.c.b16 %v1505, %v1497
    %v1682 = vpack.c.b16 %v1506, %v1498
    %v1683 = vpack.c.b16 %v1507, %v1499
    %v1684 = vpack.c.b16 %v1508, %v1500
    %v1685 = vpack.c.b16 %v1509, %v1501
    %v1686 = vpack.c.b16 %v1510, %v1502
    %v1687 = vpack.c.b16 %v1511, %v1503
    %v1688 = vpack.c.b16 %v1512, %v1504
    %v1689 = vpack.c.b16 %v1521, %v1513
    %v1690 = vpack.c.b16 %v1522, %v1514
    %v1691 = vpack.c.b16 %v1523, %v1515
    %v1692 = vpack.c.b16 %v1524, %v1516
    %v1693 = vpack.c.b16 %v1525, %v1517
    %v1694 = vpack.c.b16 %v1526, %v1518
    %v1695 = vpack.c.b16 %v1527, %v1519
    %v1696 = vpack.c.b16 %v1528, %v1520
    %v1697 = vpack.c.b16 %v1537, %v1529
    %v1698 = vpack.c.b16 %v1538, %v1530
    %v1699 = vpack.c.b16 %v1539, %v1531
    %v1700 = vpack.c.b16 %v1540, %v1532
    %v1701 = vpack.c.b16 %v1541, %v1533
    %v1702 = vpack.c.b16 %v1542, %v1534
    %v1703 = vpack.c.b16 %v1543, %v1535
    %v1704 = vpack.c.b16 %v1544, %v1536
    %v1705 = vpack.c.b16 %v1553, %v1545
    %v1706 = vpack.c.b16 %v1554, %v1546
    %v1707 = vpack.c.b16 %v1555, %v1547
    %v1708 = vpack.c.b16 %v1556, %v1548
    %v1709 = vpack.c.b16 %v1557, %v1549
    %v1710 = vpack.c.b16 %v1558, %v1550
    %v1711 = vpack.c.b16 %v1559, %v1551
    %v1712 = vpack.c.b16 %v1560, %v1552
    %v1713 = vpack.c.b16 %v1569, %v1561
    %v1714 = vpack.c.b16 %v1570, %v1562
    %v1715 = vpack.c.b16 %v1571, %v1563
    %v1716 = vpack.c.b16 %v1572, %v1564
    %v1717 = vpack.c.b16 %v1573, %v1565
    %v1718 = vpack.c.b16 %v1574, %v1566
    %v1719 = vpack.c.b16 %v1575, %v1567
    %v1720 = vpack.c.b16 %v1576, %v1568
    %v1721 = vpack.c.b16 %v1585, %v1577
    %v1722 = vpack.c.b16 %v1586, %v1578
    %v1723 = vpack.c.b16 %v1587, %v1579
    %v1724 = vpack.c.b16 %v1588, %v1580
    %v1725 = vpack.c.b16 %v1589, %v1581
    %v1726 = vpack.c.b16 %v1590, %v1582
    %v1727 = vpack.c.b16 %v1591, %v1583
    %v1728 = vpack.c.b16 %v1592, %v1584
    %v1729 = vpack.c.b16 %v1601, %v1593
    %v1730 = vpack.c.b16 %v1602, %v1594
    %v1731 = vpack.c.b16 %v1603, %v1595
    %v1732 = vpack.c.b16 %v1604, %v1596
    %v1733 = vpack.c.b16 %v1605, %v1597
    %v1734 = vpack.c.b16 %v1606, %v1598
    %v1735 = vpack.c.b16 %v1607, %v1599
    %v1736 = vpack.c.b16 %v1608, %v1600
    %1865 = vmatpush.bf16.msra.mxu0 %v1665
    %1866 = vmatpush.bf16.msra.mxu0 %v1657
    %1867 = vmatpush.bf16.msra.mxu0 %v1649
    %1868 = vmatpush.bf16.msra.mxu0 %v1641
    %1869 = vmatpush.bf16.msra.mxu0 %v1633
    %1870 = vmatpush.bf16.msra.mxu0 %v1625
    %1871 = vmatpush.bf16.msra.mxu0 %v1617
    %1872 = vmatpush.bf16.msra.mxu0 %v1609
    %1873 = vmatmul.bf16.gmra.mxu0 %v115
    %v1874 = vpop.f32.mrf.mxu0
    %v1875 = vadd.f32 %v1040, %v1874
    %v1876 = vpop.f32.mrf.mxu0
    %1877 = vdwg.mxu0
    %1878 = vmatpush.bf16.msra.mxu0 %v1729
    %1879 = vmatpush.bf16.msra.mxu0 %v1721
    %1880 = vmatpush.bf16.msra.mxu0 %v1713
    %1881 = vmatpush.bf16.msra.mxu0 %v1705
    %1882 = vmatpush.bf16.msra.mxu0 %v1697
    %1883 = vmatpush.bf16.msra.mxu0 %v1689
    %1884 = vmatpush.bf16.msra.mxu0 %v1681
    %1885 = vmatpush.bf16.msra.mxu0 %v1673
    %1886 = vmatmul.bf16.gmra.mxu0 %v116
    %v1887 = vpop.f32.mrf.mxu0
    %v1888 = vadd.f32 %v1875, %v1887
    %v1889 = vpop.f32.mrf.mxu0
    %1890 = vdwg.mxu0
    %1891 = vmatpush.bf16.msra.mxu0 %v1666
    %1892 = vmatpush.bf16.msra.mxu0 %v1658
    %1893 = vmatpush.bf16.msra.mxu0 %v1650
    %1894 = vmatpush.bf16.msra.mxu0 %v1642
    %1895 = vmatpush.bf16.msra.mxu0 %v1634
    %1896 = vmatpush.bf16.msra.mxu0 %v1626
    %1897 = vmatpush.bf16.msra.mxu0 %v1618
    %1898 = vmatpush.bf16.msra.mxu0 %v1610
    %1899 = vmatmul.bf16.gmra.mxu0 %v115
    %v1900 = vpop.f32.mrf.mxu0
    %v1901 = vadd.f32 %v1066, %v1900
    %v1902 = vpop.f32.mrf.mxu0
    %1903 = vdwg.mxu0
    %1904 = vmatpush.bf16.msra.mxu0 %v1730
    %1905 = vmatpush.bf16.msra.mxu0 %v1722
    %1906 = vmatpush.bf16.msra.mxu0 %v1714
    %1907 = vmatpush.bf16.msra.mxu0 %v1706
    %1908 = vmatpush.bf16.msra.mxu0 %v1698
    %1909 = vmatpush.bf16.msra.mxu0 %v1690
    %1910 = vmatpush.bf16.msra.mxu0 %v1682
    %1911 = vmatpush.bf16.msra.mxu0 %v1674
    %1912 = vmatmul.bf16.gmra.mxu0 %v116
    %v1913 = vpop.f32.mrf.mxu0
    %v1914 = vadd.f32 %v1901, %v1913
    %v1915 = vpop.f32.mrf.mxu0
    %1916 = vdwg.mxu0
    %1917 = vmatpush.bf16.msra.mxu0 %v1667
    %1918 = vmatpush.bf16.msra.mxu0 %v1659
    %1919 = vmatpush.bf16.msra.mxu0 %v1651
    %1920 = vmatpush.bf16.msra.mxu0 %v1643
    %1921 = vmatpush.bf16.msra.mxu0 %v1635
    %1922 = vmatpush.bf16.msra.mxu0 %v1627
    %1923 = vmatpush.bf16.msra.mxu0 %v1619
    %1924 = vmatpush.bf16.msra.mxu0 %v1611
    %1925 = vmatmul.bf16.gmra.mxu0 %v115
    %v1926 = vpop.f32.mrf.mxu0
    %v1927 = vadd.f32 %v1092, %v1926
    %v1928 = vpop.f32.mrf.mxu0
    %1929 = vdwg.mxu0
    %1930 = vmatpush.bf16.msra.mxu0 %v1731
    %1931 = vmatpush.bf16.msra.mxu0 %v1723
    %1932 = vmatpush.bf16.msra.mxu0 %v1715
    %1933 = vmatpush.bf16.msra.mxu0 %v1707
    %1934 = vmatpush.bf16.msra.mxu0 %v1699
    %1935 = vmatpush.bf16.msra.mxu0 %v1691
    %1936 = vmatpush.bf16.msra.mxu0 %v1683
    %1937 = vmatpush.bf16.msra.mxu0 %v1675
    %1938 = vmatmul.bf16.gmra.mxu0 %v116
    %v1939 = vpop.f32.mrf.mxu0
    %v1940 = vadd.f32 %v1927, %v1939
    %v1941 = vpop.f32.mrf.mxu0
    %1942 = vdwg.mxu0
    %1943 = vmatpush.bf16.msra.mxu0 %v1668
    %1944 = vmatpush.bf16.msra.mxu0 %v1660
    %1945 = vmatpush.bf16.msra.mxu0 %v1652
    %1946 = vmatpush.bf16.msra.mxu0 %v1644
    %1947 = vmatpush.bf16.msra.mxu0 %v1636
    %1948 = vmatpush.bf16.msra.mxu0 %v1628
    %1949 = vmatpush.bf16.msra.mxu0 %v1620
    %1950 = vmatpush.bf16.msra.mxu0 %v1612
    %1951 = vmatmul.bf16.gmra.mxu0 %v115
    %v1952 = vpop.f32.mrf.mxu0
    %v1953 = vadd.f32 %v1118, %v1952
    %v1954 = vpop.f32.mrf.mxu0
    %1955 = vdwg.mxu0
    %1956 = vmatpush.bf16.msra.mxu0 %v1732
    %1957 = vmatpush.bf16.msra.mxu0 %v1724
    %1958 = vmatpush.bf16.msra.mxu0 %v1716
    %1959 = vmatpush.bf16.msra.mxu0 %v1708
    %1960 = vmatpush.bf16.msra.mxu0 %v1700
    %1961 = vmatpush.bf16.msra.mxu0 %v1692
    %1962 = vmatpush.bf16.msra.mxu0 %v1684
    %1963 = vmatpush.bf16.msra.mxu0 %v1676
    %1964 = vmatmul.bf16.gmra.mxu0 %v116
    %v1965 = vpop.f32.mrf.mxu0
    %v1966 = vadd.f32 %v1953, %v1965
    %v1967 = vpop.f32.mrf.mxu0
    %1968 = vdwg.mxu0
    %1969 = vmatpush.bf16.msra.mxu0 %v1669
    %1970 = vmatpush.bf16.msra.mxu0 %v1661
    %1971 = vmatpush.bf16.msra.mxu0 %v1653
    %1972 = vmatpush.bf16.msra.mxu0 %v1645
    %1973 = vmatpush.bf16.msra.mxu0 %v1637
    %1974 = vmatpush.bf16.msra.mxu0 %v1629
    %1975 = vmatpush.bf16.msra.mxu0 %v1621
    %1976 = vmatpush.bf16.msra.mxu0 %v1613
    %1977 = vmatmul.bf16.gmra.mxu0 %v115
    %v1978 = vpop.f32.mrf.mxu0
    %v1979 = vadd.f32 %v1144, %v1978
    %v1980 = vpop.f32.mrf.mxu0
    %1981 = vdwg.mxu0
    %1982 = vmatpush.bf16.msra.mxu0 %v1733
    %1983 = vmatpush.bf16.msra.mxu0 %v1725
    %1984 = vmatpush.bf16.msra.mxu0 %v1717
    %1985 = vmatpush.bf16.msra.mxu0 %v1709
    %1986 = vmatpush.bf16.msra.mxu0 %v1701
    %1987 = vmatpush.bf16.msra.mxu0 %v1693
    %1988 = vmatpush.bf16.msra.mxu0 %v1685
    %1989 = vmatpush.bf16.msra.mxu0 %v1677
    %1990 = vmatmul.bf16.gmra.mxu0 %v116
    %v1991 = vpop.f32.mrf.mxu0
    %v1992 = vadd.f32 %v1979, %v1991
    %v1993 = vpop.f32.mrf.mxu0
    %1994 = vdwg.mxu0
    %1995 = vmatpush.bf16.msra.mxu0 %v1670
    %1996 = vmatpush.bf16.msra.mxu0 %v1662
    %1997 = vmatpush.bf16.msra.mxu0 %v1654
    %1998 = vmatpush.bf16.msra.mxu0 %v1646
    %1999 = vmatpush.bf16.msra.mxu0 %v1638
    %2000 = vmatpush.bf16.msra.mxu0 %v1630
    %2001 = vmatpush.bf16.msra.mxu0 %v1622
    %2002 = vmatpush.bf16.msra.mxu0 %v1614
    %2003 = vmatmul.bf16.gmra.mxu0 %v115
    %v2004 = vpop.f32.mrf.mxu0
    %v2005 = vadd.f32 %v1170, %v2004
    %v2006 = vpop.f32.mrf.mxu0
    %2007 = vdwg.mxu0
    %2008 = vmatpush.bf16.msra.mxu0 %v1734
    %2009 = vmatpush.bf16.msra.mxu0 %v1726
    %2010 = vmatpush.bf16.msra.mxu0 %v1718
    %2011 = vmatpush.bf16.msra.mxu0 %v1710
    %2012 = vmatpush.bf16.msra.mxu0 %v1702
    %2013 = vmatpush.bf16.msra.mxu0 %v1694
    %2014 = vmatpush.bf16.msra.mxu0 %v1686
    %2015 = vmatpush.bf16.msra.mxu0 %v1678
    %2016 = vmatmul.bf16.gmra.mxu0 %v116
    %v2017 = vpop.f32.mrf.mxu0
    %v2018 = vadd.f32 %v2005, %v2017
    %v2019 = vpop.f32.mrf.mxu0
    %2020 = vdwg.mxu0
    %2021 = vmatpush.bf16.msra.mxu0 %v1671
    %2022 = vmatpush.bf16.msra.mxu0 %v1663
    %2023 = vmatpush.bf16.msra.mxu0 %v1655
    %2024 = vmatpush.bf16.msra.mxu0 %v1647
    %2025 = vmatpush.bf16.msra.mxu0 %v1639
    %2026 = vmatpush.bf16.msra.mxu0 %v1631
    %2027 = vmatpush.bf16.msra.mxu0 %v1623
    %2028 = vmatpush.bf16.msra.mxu0 %v1615
    %2029 = vmatmul.bf16.gmra.mxu0 %v115
    %v2030 = vpop.f32.mrf.mxu0
    %v2031 = vadd.f32 %v1196, %v2030
    %v2032 = vpop.f32.mrf.mxu0
    %2033 = vdwg.mxu0
    %2034 = vmatpush.bf16.msra.mxu0 %v1735
    %2035 = vmatpush.bf16.msra.mxu0 %v1727
    %2036 = vmatpush.bf16.msra.mxu0 %v1719
    %2037 = vmatpush.bf16.msra.mxu0 %v1711
    %2038 = vmatpush.bf16.msra.mxu0 %v1703
    %2039 = vmatpush.bf16.msra.mxu0 %v1695
    %2040 = vmatpush.bf16.msra.mxu0 %v1687
    %2041 = vmatpush.bf16.msra.mxu0 %v1679
    %2042 = vmatmul.bf16.gmra.mxu0 %v116
    %v2043 = vpop.f32.mrf.mxu0
    %v2044 = vadd.f32 %v2031, %v2043
    %v2045 = vpop.f32.mrf.mxu0
    %2046 = vdwg.mxu0
    %2047 = vmatpush.bf16.msra.mxu0 %v1672
    %2048 = vmatpush.bf16.msra.mxu0 %v1664
    %2049 = vmatpush.bf16.msra.mxu0 %v1656
    %2050 = vmatpush.bf16.msra.mxu0 %v1648
    %2051 = vmatpush.bf16.msra.mxu0 %v1640
    %2052 = vmatpush.bf16.msra.mxu0 %v1632
    %2053 = vmatpush.bf16.msra.mxu0 %v1624
    %2054 = vmatpush.bf16.msra.mxu0 %v1616
    %2055 = vmatmul.bf16.gmra.mxu0 %v115
    %v2056 = vpop.f32.mrf.mxu0
    %v2057 = vadd.f32 %v1222, %v2056
    %v2058 = vpop.f32.mrf.mxu0
    %2059 = vdwg.mxu0
    %2060 = vmatpush.bf16.msra.mxu0 %v1736
    %2061 = vmatpush.bf16.msra.mxu0 %v1728
    %2062 = vmatpush.bf16.msra.mxu0 %v1720
    %2063 = vmatpush.bf16.msra.mxu0 %v1712
    %2064 = vmatpush.bf16.msra.mxu0 %v1704
    %2065 = vmatpush.bf16.msra.mxu0 %v1696
    %2066 = vmatpush.bf16.msra.mxu0 %v1688
    %2067 = vmatpush.bf16.msra.mxu0 %v1680
    %2068 = vmatmul.bf16.gmra.mxu0 %v116
    %v2069 = vpop.f32.mrf.mxu0
    %v2070 = vadd.f32 %v2057, %v2069
    %v2071 = vpop.f32.mrf.mxu0
    %2072 = vdwg.mxu0
    %v2073 = vld [vmem:[#allocation11] sm:$0xff]
    %v2075 = vperm.slane %v2073, 0
    %v2076 = vperm.slane %v2073, 1
    %v2077 = vperm.slane %v2073, 2
    %v2078 = vperm.slane %v2073, 3
    %v2079 = vperm.slane %v2073, 4
    %v2080 = vperm.slane %v2073, 5
    %v2081 = vperm.slane %v2073, 6
    %v2082 = vperm.slane %v2073, 7
    %v2091 = vadd.f32 %v1888, %v2075
    %v2092 = vadd.f32 %v1914, %v2076
    %v2093 = vadd.f32 %v1940, %v2077
    %v2094 = vadd.f32 %v1966, %v2078
    %v2095 = vadd.f32 %v1992, %v2079
    %v2096 = vadd.f32 %v2018, %v2080
    %v2097 = vadd.f32 %v2044, %v2081
    %v2098 = vadd.f32 %v2070, %v2082
    %v2099 = vxor.u32 %v2091, 2147483648
    %v2100 = vxor.u32 %v2092, 2147483648
    %v2101 = vmul.f32 %v2099, 1.442695
    %v2102 = vpow.pop %v2101
    %v2103 = vmul.f32 %v2100, 1.442695
    %v2104 = vpow.pop %v2103
    %v2105 = vadd.f32 %v2102, 1.0
    %v2106 = vadd.f32 %v2104, 1.0
    %v2107 = vrcp.pop %v2105
    %v2108 = vmul.f32 %v2105, %v2107
    %v2109 = vsub.f32 1.0, %v2108
    %v2110 = vmul.f32 %v2107, %v2109
    %v2111 = vadd.f32 %v2107, %v2110
    %vm2112 = vweird.f32 %v2105
    %vm2113 = vweird.f32 %v2107
    %vm2114 = vmor %vm2112, %vm2113
    %v2115 = vsel %vm2114, %v2107, %v2111
    %v2116 = vand.u32 2147483647, %v2105
    %vm2117 = vcmp.eq.f32.partialorder %v2116, 8.507059e+37
    %v2118 = vand.u32 %v2105, 2147483648
    %v2119 = vor.u32 1.1754944e-38, %v2118
    %v2120 = vsel %vm2117, %v2119, %v2115
    %v2121 = vmul.f32 1.0, %v2120
    %v2122 = vrcp.pop %v2106
    %v2123 = vmul.f32 %v2106, %v2122
    %v2124 = vsub.f32 1.0, %v2123
    %v2125 = vmul.f32 %v2122, %v2124
    %v2126 = vadd.f32 %v2122, %v2125
    %vm2127 = vweird.f32 %v2106
    %vm2128 = vweird.f32 %v2122
    %vm2129 = vmor %vm2127, %vm2128
    %v2130 = vsel %vm2129, %v2122, %v2126
    %v2131 = vand.u32 2147483647, %v2106
    %vm2132 = vcmp.eq.f32.partialorder %v2131, 8.507059e+37
    %v2133 = vand.u32 %v2106, 2147483648
    %v2134 = vor.u32 1.1754944e-38, %v2133
    %v2135 = vsel %vm2132, %v2134, %v2130
    %v2136 = vmul.f32 1.0, %v2135
    %v2137 = vxor.u32 %v2093, 2147483648
    %v2138 = vxor.u32 %v2094, 2147483648
    %v2139 = vmul.f32 %v2137, 1.442695
    %v2140 = vpow.pop %v2139
    %v2141 = vmul.f32 %v2138, 1.442695
    %v2142 = vpow.pop %v2141
    %v2143 = vadd.f32 %v2140, 1.0
    %v2144 = vadd.f32 %v2142, 1.0
    %v2145 = vrcp.pop %v2143
    %v2146 = vmul.f32 %v2143, %v2145
    %v2147 = vsub.f32 1.0, %v2146
    %v2148 = vmul.f32 %v2145, %v2147
    %v2149 = vadd.f32 %v2145, %v2148
    %vm2150 = vweird.f32 %v2143
    %vm2151 = vweird.f32 %v2145
    %vm2152 = vmor %vm2150, %vm2151
    %v2153 = vsel %vm2152, %v2145, %v2149
    %v2154 = vand.u32 2147483647, %v2143
    %vm2155 = vcmp.eq.f32.partialorder %v2154, 8.507059e+37
    %v2156 = vand.u32 %v2143, 2147483648
    %v2157 = vor.u32 1.1754944e-38, %v2156
    %v2158 = vsel %vm2155, %v2157, %v2153
    %v2159 = vmul.f32 1.0, %v2158
    %v2160 = vrcp.pop %v2144
    %v2161 = vmul.f32 %v2144, %v2160
    %v2162 = vsub.f32 1.0, %v2161
    %v2163 = vmul.f32 %v2160, %v2162
    %v2164 = vadd.f32 %v2160, %v2163
    %vm2165 = vweird.f32 %v2144
    %vm2166 = vweird.f32 %v2160
    %vm2167 = vmor %vm2165, %vm2166
    %v2168 = vsel %vm2167, %v2160, %v2164
    %v2169 = vand.u32 2147483647, %v2144
    %vm2170 = vcmp.eq.f32.partialorder %v2169, 8.507059e+37
    %v2171 = vand.u32 %v2144, 2147483648
    %v2172 = vor.u32 1.1754944e-38, %v2171
    %v2173 = vsel %vm2170, %v2172, %v2168
    %v2174 = vmul.f32 1.0, %v2173
    %v2175 = vtanh.pop %v2095
    %v2176 = vtanh.pop %v2096
    %v2177 = vxor.u32 %v2097, 2147483648
    %v2178 = vxor.u32 %v2098, 2147483648
    %v2179 = vmul.f32 %v2177, 1.442695
    %v2180 = vpow.pop %v2179
    %v2181 = vmul.f32 %v2178, 1.442695
    %v2182 = vpow.pop %v2181
    %v2183 = vadd.f32 %v2180, 1.0
    %v2184 = vadd.f32 %v2182, 1.0
    %v2185 = vrcp.pop %v2183
    %v2186 = vmul.f32 %v2183, %v2185
    %v2187 = vsub.f32 1.0, %v2186
    %v2188 = vmul.f32 %v2185, %v2187
    %v2189 = vadd.f32 %v2185, %v2188
    %vm2190 = vweird.f32 %v2183
    %vm2191 = vweird.f32 %v2185
    %vm2192 = vmor %vm2190, %vm2191
    %v2193 = vsel %vm2192, %v2185, %v2189
    %v2194 = vand.u32 2147483647, %v2183
    %vm2195 = vcmp.eq.f32.partialorder %v2194, 8.507059e+37
    %v2196 = vand.u32 %v2183, 2147483648
    %v2197 = vor.u32 1.1754944e-38, %v2196
    %v2198 = vsel %vm2195, %v2197, %v2193
    %v2199 = vmul.f32 1.0, %v2198
    %v2200 = vrcp.pop %v2184
    %v2201 = vmul.f32 %v2184, %v2200
    %v2202 = vsub.f32 1.0, %v2201
    %v2203 = vmul.f32 %v2200, %v2202
    %v2204 = vadd.f32 %v2200, %v2203
    %vm2205 = vweird.f32 %v2184
    %vm2206 = vweird.f32 %v2200
    %vm2207 = vmor %vm2205, %vm2206
    %v2208 = vsel %vm2207, %v2200, %v2204
    %v2209 = vand.u32 2147483647, %v2184
    %vm2210 = vcmp.eq.f32.partialorder %v2209, 8.507059e+37
    %v2211 = vand.u32 %v2184, 2147483648
    %v2212 = vor.u32 1.1754944e-38, %v2211
    %v2213 = vsel %vm2210, %v2212, %v2208
    %v2214 = vmul.f32 1.0, %v2213
    %v2215 = vld [vmem:[#allocation7] sm:$0xff]
    %v2216 = vld [vmem:[#allocation7 + $0x8] sm:$0xff]
    %v2217 = vmul.f32 %v2159, %v2215
    %v2218 = vmul.f32 %v2174, %v2216
    %v2219 = vmul.f32 %v2121, %v2175
    %v2220 = vmul.f32 %v2136, %v2176
    %v2221 = vadd.f32 %v2217, %v2219
    %v2222 = vadd.f32 %v2218, %v2220
    %2223 = vst [vmem:[#allocation14] sm:$0xff] %v2221
    %2224 = vst [vmem:[#allocation14 + $0x8] sm:$0xff] %v2222
    %v2225 = vtanh.pop %v2221
    %v2226 = vtanh.pop %v2222
    %v2227 = vmul.f32 %v2199, %v2225
    %v2228 = vmul.f32 %v2214, %v2226
    %2229 = vst [vmem:[#allocation13] sm:$0xff] %v2227
    %2230 = vst [vmem:[#allocation13 + $0x8] sm:$0xff] %v2228
    // Predicated region
    $region50: #{lstm_cell.1} parent=1 // pred_check
      _
    $region51: #{lstm_cell.1} parent=1 // pred_check_branch
      %2232 = sbr.rel (0) target = $region53
    $region52: #{lstm_cell.1} parent=1 // pred_region
      %2234 = vsyncadd [#allocation4], 0
      %s2236 = sshll.u32 [#allocation13], 4
      %s2237 = int_to_ptr.vmem [resolvable:$true] %s2236
      %s2238 = sshll.u32 %s6, 4
      %s2239 = int_to_ptr.hbm [resolvable:$true] %s2238
      %2241 = dma.vmem_to_hbm [thread:$0]  %s2237, 256, %s2239, [#allocation4]
    $region53: #{lstm_cell.1} parent=1 // pred_fallthru
      _
    // Predicated region
    $region54: #{lstm_cell.1} parent=1 // pred_check
      _
    $region55: #{lstm_cell.1} parent=1 // pred_check_branch
      %2243 = sbr.rel (0) target = $region57
    $region56: #{lstm_cell.1} parent=1 // pred_region
      %2245 = vsyncadd [#allocation15], 0
      %s2247 = sshll.u32 [#allocation14], 4
      %s2248 = int_to_ptr.vmem [resolvable:$true] %s2247
      %s2249 = sshll.u32 %s7, 4
      %s2250 = int_to_ptr.hbm [resolvable:$true] %s2249
      %2252 = dma.vmem_to_hbm [thread:$0]  %s2248, 256, %s2250, [#allocation15]
    $region57: #{lstm_cell.1} parent=1 // pred_fallthru
      _
    // Predicated region
    $region58: #{lstm_cell.1} parent=1 // pred_check
      _
    $region59: #{lstm_cell.1} parent=1 // pred_check_branch
      %2254 = sbr.rel (0) target = $region61
    $region60: #{lstm_cell.1} parent=1 // pred_region
      %2256 = dma.done [#allocation4], 256
    $region61: #{lstm_cell.1} parent=1 // pred_fallthru
      _
    // Predicated region
    $region62: #{lstm_cell.1} parent=1 // pred_check
      _
    $region63: #{lstm_cell.1} parent=1 // pred_check_branch
      %2258 = sbr.rel (0) target = $region65
    $region64: #{lstm_cell.1} parent=1 // pred_region
      %2260 = dma.done [#allocation15], 256
    $region65: #{lstm_cell.1} parent=1 // pred_fallthru
      _
    %2261 = vsyncpa [#allocation3], 1
    %2262 = vsyncpa [#allocation6], 1
    %2263 = vsyncpa [#allocation9], 1
    %2264 = vsyncpa [#allocation12], 1
    %2265 = vsyncpa [#allocation4], 1
    %2266 = vsyncpa [#allocation15], 1

</llo_original>
